<compile_context>
chip_gen: v6e
topology: v6e:2x2x1
jax: 0.10.0
libtpu: 0.0.40
codegen_flags: <defaults>
</compile_context>

<pallas_src>
import functools

import jax
import jax.numpy as jnp
from jax.experimental import pallas as pl
from jax.experimental.pallas import tpu as pltpu


def _conv_block_kernel(x_ref, w_ref, o_ref, *scratch, kh, kw, pad,
                       h_out, w_out, c_out, k_pad):
    """One batch tile per grid step.

    x_ref    : (B_TILE, H, W, C_in)              input block, compute dtype
    w_ref    : (K_pad, C_out)                    flattened HWIO weights (resident)
    o_ref    : (B_TILE, H_out, W_out, C_out)     un-padded NHWC output block
    scratch  : [xpad_ref (only if pad > 0), lhs_ref]
    """
    b_tile, h, w, c_in = x_ref.shape
    m = b_tile * h_out * w_out
    k = kh * kw * c_in

    if pad > 0:
        xpad_ref, lhs_ref = scratch
        hp = h + 2 * pad
        wp = w + 2 * pad
        zdt = xpad_ref.dtype
        # Zero only the halo ring; the interior is fully overwritten below.
        xpad_ref[:, :pad, :, :] = jnp.zeros((b_tile, pad, wp, c_in), zdt)
        xpad_ref[:, hp - pad:, :, :] = jnp.zeros((b_tile, pad, wp, c_in), zdt)
        xpad_ref[:, pad:pad + h, :pad, :] = jnp.zeros((b_tile, h, pad, c_in), zdt)
        xpad_ref[:, pad:pad + h, wp - pad:, :] = jnp.zeros((b_tile, h, pad, c_in), zdt)
        xpad_ref[:, pad:pad + h, pad:pad + w, :] = x_ref[...]
        src = xpad_ref
    else:
        (lhs_ref,) = scratch
        src = x_ref            # pad == 0: slice windows straight from the input

    # Zero the (tiny) K-padding columns every step so uninitialized VMEM can
    # never inject NaN/Inf into the matmul (matching weight rows are zero).
    if k_pad > k:
        lhs_ref[:, pl.ds(k, k_pad - k)] = jnp.zeros((m, k_pad - k), lhs_ref.dtype)

    # In-place im2col: one (m, C_in) tap store per (i, j); (kh, kw, c_in)
    # column order matches the HWIO weight flattening in the wrapper.
    for i in range(kh):                      # small static unrolled loops
        for j in range(kw):
            tap = src[:, i:i + h_out, j:j + w_out, :]     # (B, H_out, W_out, C_in)
            lhs_ref[:, pl.ds((i * kw + j) * c_in, c_in)] = tap.reshape(m, c_in)

    # Single fused-K MXU matmul, f32 accumulation (already compute dtype; no
    # in-kernel cast pass).
    acc = jax.lax.dot_general(
        lhs_ref[...], w_ref[...],
        dimension_numbers=(((1,), (0,)), ((), ())),
        preferred_element_type=jnp.float32,
    )                                                      # (m, C_out)

    o_ref[...] = acc.reshape(b_tile, h_out, w_out, c_out).astype(o_ref.dtype)


def _pick_batch_tile(n, rows_per_image, max_rows=1024):
    """Largest divisor of n whose M-tile stays under `max_rows`, while keeping
    >= 2 grid points whenever n >= 2 (pipelining + v7x megacore)."""
    best = 1
    for cand in range(1, n + 1):
        if n % cand:
            continue
        if cand * rows_per_image > max_rows:
            continue
        if n >= 2 and cand == n:
            continue            # never collapse the whole batch into one step
        best = cand
    return best


def conv_block_forward(x_nchw, weight_oihw, *, stride=1, padding=0,
                       mxu_dtype=None):
    """ConvBlock forward (conv only; norm/act/pool are Identity, see header).

    x_nchw      : (N, C_in, H, W)
    weight_oihw : (C_out, C_in, KH, KW)
    mxu_dtype   : operand dtype for the MXU (e.g. jnp.bfloat16); accumulation
                  is always f32.  Defaults to x's dtype.
    returns     : (N, C_out, H_out, W_out)
    """
    assert stride == 1, "kernel implemented for stride=1 (module default)"
    n, c_in, h, w = x_nchw.shape
    c_out, c_in_w, kh, kw = weight_oihw.shape
    assert c_in == c_in_w

    h_out = h + 2 * padding - kh + 1
    w_out = w + 2 * padding - kw + 1
    assert h_out > 0 and w_out > 0, "conv produces an empty output"

    out_dtype = x_nchw.dtype
    compute_dtype = jnp.dtype(mxu_dtype) if mxu_dtype is not None else x_nchw.dtype

    k = kh * kw * c_in
    k_pad = ((k + 7) // 8) * 8          # sublane-align the fused K axis

    # One-time layout glue in plain JAX.  Activations are cast to the MXU
    # compute dtype HERE (halves input DMA bytes for bf16 and removes the
    # in-kernel cast of the 9x-sized im2col buffer).
    x_nhwc = jnp.transpose(x_nchw, (0, 2, 3, 1)).astype(compute_dtype)
    w_flat = jnp.transpose(weight_oihw, (2, 3, 1, 0)).reshape(k, c_out)   # HWIO
    w_flat = jnp.pad(w_flat, ((0, k_pad - k), (0, 0))).astype(compute_dtype)

    b_tile = _pick_batch_tile(n, h_out * w_out)
    grid = (n // b_tile,)
    m_tile = b_tile * h_out * w_out

    kernel = functools.partial(
        _conv_block_kernel, kh=kh, kw=kw, pad=padding,
        h_out=h_out, w_out=w_out, c_out=c_out, k_pad=k_pad)

    scratch_shapes = []
    if padding > 0:
        scratch_shapes.append(
            pltpu.VMEM((b_tile, h + 2 * padding, w + 2 * padding, c_in),
                       compute_dtype))
    scratch_shapes.append(pltpu.VMEM((m_tile, k_pad), compute_dtype))

    out_nhwc = pl.pallas_call(
        kernel,
        out_shape=jax.ShapeDtypeStruct((n, h_out, w_out, c_out), out_dtype),
        grid_spec=pltpu.PrefetchScalarGridSpec(
            num_scalar_prefetch=0,
            grid=grid,
            in_specs=[
                # One batch tile per grid step; last two block dims equal the
                # full array dims so the (8,128) rule is satisfied.
                pl.BlockSpec((b_tile, h, w, c_in), lambda b: (b, 0, 0, 0)),
                # Full flattened weights, resident across the grid.
                pl.BlockSpec((k_pad, c_out), lambda b: (0, 0)),
            ],
            # Un-padded NHWC output block: ~16x less HBM writeback than the
            # old 128-lane-padded slab, and no wrapper slice pass.
            out_specs=pl.BlockSpec((b_tile, h_out, w_out, c_out),
                                   lambda b: (b, 0, 0, 0)),
            scratch_shapes=scratch_shapes,
        ),
        compiler_params=pltpu.CompilerParams(
            dimension_semantics=("parallel",),
            # 40 MiB: above v5e's 16 MiB scoped default, with headroom under
            # v7x's 64 MiB physical VMEM (double-buffers + compiler scratch).
            vmem_limit_bytes=40 * 1024 * 1024,
        ),
    )(x_nhwc, w_flat)

    return jnp.transpose(out_nhwc, (0, 3, 1, 2))                  # NHWC -> NCHW


if __name__ == "__main__":
    key = jax.random.PRNGKey(0)
    k_x, k_w = jax.random.split(key)

    # Shapes consistent with ConvBlock(4, 8, kernel_size=3, padding=1).
    N, C_in, H, W = 2, 4, 16, 16
    C_out, KH, KW = 8, 3, 3
    PAD = 1

    x = jax.random.normal(k_x, (N, C_in, H, W), dtype=jnp.float32)
    fan_in = C_in * KH * KW
    weight = jax.random.normal(
        k_w, (C_out, C_in, KH, KW), dtype=jnp.float32) / jnp.sqrt(fan_in)

    # Reference: XLA's native conv (same semantics as nn.Conv2d, bias=False).
    y_ref = jax.lax.conv_general_dilated(
        x, weight, window_strides=(1, 1), padding=((PAD, PAD), (PAD, PAD)),
        dimension_numbers=("NCHW", "OIHW", "NCHW"))

    # 1) f32 MXU operands: strict check.
    y = conv_block_forward(x, weight, stride=1, padding=PAD)
    y = jax.block_until_ready(y)
    assert y.shape == (N, C_out, H, W)
    assert jnp.allclose(y, y_ref, atol=2e-4, rtol=2e-4)

    # 2) bf16 MXU operands (f32 accumulation): loose check.
    y_bf16 = conv_block_forward(x, weight, stride=1, padding=PAD,
                                mxu_dtype=jnp.bfloat16)
    y_bf16 = jax.block_until_ready(y_bf16)
    assert y_bf16.shape == (N, C_out, H, W)
    assert jnp.allclose(y_bf16, y_ref, atol=5e-2, rtol=5e-2)

    print("KERNEL_OK")
</pallas_src>

<mosaic_0001>
module attributes {stable_mosaic.version = 11 : i64} {
  func.func @_conv_block_kernel(%arg0: i32, %arg1: memref<1x16x16x4xf32, #tpu.memory_space<vmem>>, %arg2: memref<40x8xf32, #tpu.memory_space<vmem>>, %arg3: memref<1x16x16x8xf32, #tpu.memory_space<vmem>>, %arg4: memref<1x18x18x4xf32, #tpu.memory_space<vmem>>, %arg5: memref<256x40xf32, #tpu.memory_space<vmem>>) attributes {dimension_semantics = [#tpu.dimension_semantics<parallel>], iteration_bounds = array<i64: 2>, scalar_prefetch = 0 : i64, scratch_operands = 2 : i64, tpu.core_type = #tpu.core_type<tc>, window_params = [{transform_indices = @transform_0, window_bounds = array<i64: 1, 16, 16, 4>}, {pipeline_mode = #tpu.pipeline_mode<synchronous>, transform_indices = @transform_1, window_bounds = array<i64: 40, 8>}, {transform_indices = @transform_2, window_bounds = array<i64: 1, 16, 16, 8>}]} {
    %cst = arith.constant 0.000000e+00 : f32
    %0 = vector.broadcast %cst : f32 to vector<1x1x18x4xf32>
    %c0 = arith.constant 0 : index
    %c0_0 = arith.constant 0 : index
    %c0_1 = arith.constant 0 : index
    %c0_2 = arith.constant 0 : index
    %1 = vector.load %arg4[%c0, %c0_0, %c0_1, %c0_2] : memref<1x18x18x4xf32, #tpu.memory_space<vmem>>, vector<1x1x18x4xf32>
    tpu.vector_store %arg4[%c0, %c0_0, %c0_1, %c0_2], %0 {strides = array<i32>} : memref<1x18x18x4xf32, #tpu.memory_space<vmem>>, vector<1x1x18x4xf32>,
    %cst_3 = arith.constant 0.000000e+00 : f32
    %2 = vector.broadcast %cst_3 : f32 to vector<1x1x18x4xf32>
    %c0_4 = arith.constant 0 : index
    %c17 = arith.constant 17 : index
    %c0_5 = arith.constant 0 : index
    %c0_6 = arith.constant 0 : index
    %3 = vector.load %arg4[%c0_4, %c17, %c0_5, %c0_6] : memref<1x18x18x4xf32, #tpu.memory_space<vmem>>, vector<1x1x18x4xf32>
    tpu.vector_store %arg4[%c0_4, %c17, %c0_5, %c0_6], %2 {strides = array<i32>} : memref<1x18x18x4xf32, #tpu.memory_space<vmem>>, vector<1x1x18x4xf32>,
    %cst_7 = arith.constant 0.000000e+00 : f32
    %4 = vector.broadcast %cst_7 : f32 to vector<1x16x1x4xf32>
    %c0_8 = arith.constant 0 : index
    %c1 = arith.constant 1 : index
    %c0_9 = arith.constant 0 : index
    %c0_10 = arith.constant 0 : index
    %5 = vector.load %arg4[%c0_8, %c1, %c0_9, %c0_10] : memref<1x18x18x4xf32, #tpu.memory_space<vmem>>, vector<1x16x1x4xf32>
    tpu.vector_store %arg4[%c0_8, %c1, %c0_9, %c0_10], %4 {strides = array<i32>} : memref<1x18x18x4xf32, #tpu.memory_space<vmem>>, vector<1x16x1x4xf32>,
    %cst_11 = arith.constant 0.000000e+00 : f32
    %6 = vector.broadcast %cst_11 : f32 to vector<1x16x1x4xf32>
    %c0_12 = arith.constant 0 : index
    %c1_13 = arith.constant 1 : index
    %c17_14 = arith.constant 17 : index
    %c0_15 = arith.constant 0 : index
    %7 = vector.load %arg4[%c0_12, %c1_13, %c17_14, %c0_15] : memref<1x18x18x4xf32, #tpu.memory_space<vmem>>, vector<1x16x1x4xf32>
    tpu.vector_store %arg4[%c0_12, %c1_13, %c17_14, %c0_15], %6 {strides = array<i32>} : memref<1x18x18x4xf32, #tpu.memory_space<vmem>>, vector<1x16x1x4xf32>,
    %c0_16 = arith.constant 0 : index
    %c0_17 = arith.constant 0 : index
    %c0_18 = arith.constant 0 : index
    %c0_19 = arith.constant 0 : index
    %8 = vector.load %arg1[%c0_16, %c0_17, %c0_18, %c0_19] : memref<1x16x16x4xf32, #tpu.memory_space<vmem>>, vector<1x16x16x4xf32>
    %c0_20 = arith.constant 0 : index
    %c1_21 = arith.constant 1 : index
    %c1_22 = arith.constant 1 : index
    %c0_23 = arith.constant 0 : index
    %9 = vector.load %arg4[%c0_20, %c1_21, %c1_22, %c0_23] : memref<1x18x18x4xf32, #tpu.memory_space<vmem>>, vector<1x16x16x4xf32>
    tpu.vector_store %arg4[%c0_20, %c1_21, %c1_22, %c0_23], %8 {strides = array<i32>} : memref<1x18x18x4xf32, #tpu.memory_space<vmem>>, vector<1x16x16x4xf32>,
    %cst_24 = arith.constant 0.000000e+00 : f32
    %10 = vector.broadcast %cst_24 : f32 to vector<256x4xf32>
    %c0_25 = arith.constant 0 : index
    %c36 = arith.constant 36 : index
    %11 = vector.load %arg5[%c0_25, %c36] : memref<256x40xf32, #tpu.memory_space<vmem>>, vector<256x4xf32>
    tpu.vector_store %arg5[%c0_25, %c36], %10 {strides = array<i32>} : memref<256x40xf32, #tpu.memory_space<vmem>>, vector<256x4xf32>,
    %c0_26 = arith.constant 0 : index
    %c0_27 = arith.constant 0 : index
    %c0_28 = arith.constant 0 : index
    %c0_29 = arith.constant 0 : index
    %12 = vector.load %arg4[%c0_26, %c0_27, %c0_28, %c0_29] : memref<1x18x18x4xf32, #tpu.memory_space<vmem>>, vector<1x16x16x4xf32>
    %13 = vector.shape_cast %12 : vector<1x16x16x4xf32> to vector<256x4xf32>
    %c0_30 = arith.constant 0 : index
    %c0_31 = arith.constant 0 : index
    %14 = vector.load %arg5[%c0_30, %c0_31] : memref<256x40xf32, #tpu.memory_space<vmem>>, vector<256x4xf32>
    tpu.vector_store %arg5[%c0_30, %c0_31], %13 {strides = array<i32>} : memref<256x40xf32, #tpu.memory_space<vmem>>, vector<256x4xf32>,
    %c0_32 = arith.constant 0 : index
    %c0_33 = arith.constant 0 : index
    %c1_34 = arith.constant 1 : index
    %c0_35 = arith.constant 0 : index
    %15 = vector.load %arg4[%c0_32, %c0_33, %c1_34, %c0_35] : memref<1x18x18x4xf32, #tpu.memory_space<vmem>>, vector<1x16x16x4xf32>
    %16 = vector.shape_cast %15 : vector<1x16x16x4xf32> to vector<256x4xf32>
    %c0_36 = arith.constant 0 : index
    %c4 = arith.constant 4 : index
    %17 = vector.load %arg5[%c0_36, %c4] : memref<256x40xf32, #tpu.memory_space<vmem>>, vector<256x4xf32>
    tpu.vector_store %arg5[%c0_36, %c4], %16 {strides = array<i32>} : memref<256x40xf32, #tpu.memory_space<vmem>>, vector<256x4xf32>,
    %c0_37 = arith.constant 0 : index
    %c0_38 = arith.constant 0 : index
    %c2 = arith.constant 2 : index
    %c0_39 = arith.constant 0 : index
    %18 = vector.load %arg4[%c0_37, %c0_38, %c2, %c0_39] : memref<1x18x18x4xf32, #tpu.memory_space<vmem>>, vector<1x16x16x4xf32>
    %19 = vector.shape_cast %18 : vector<1x16x16x4xf32> to vector<256x4xf32>
    %c0_40 = arith.constant 0 : index
    %c8 = arith.constant 8 : index
    %20 = vector.load %arg5[%c0_40, %c8] : memref<256x40xf32, #tpu.memory_space<vmem>>, vector<256x4xf32>
    tpu.vector_store %arg5[%c0_40, %c8], %19 {strides = array<i32>} : memref<256x40xf32, #tpu.memory_space<vmem>>, vector<256x4xf32>,
    %c0_41 = arith.constant 0 : index
    %c1_42 = arith.constant 1 : index
    %c0_43 = arith.constant 0 : index
    %c0_44 = arith.constant 0 : index
    %21 = vector.load %arg4[%c0_41, %c1_42, %c0_43, %c0_44] : memref<1x18x18x4xf32, #tpu.memory_space<vmem>>, vector<1x16x16x4xf32>
    %22 = vector.shape_cast %21 : vector<1x16x16x4xf32> to vector<256x4xf32>
    %c0_45 = arith.constant 0 : index
    %c12 = arith.constant 12 : index
    %23 = vector.load %arg5[%c0_45, %c12] : memref<256x40xf32, #tpu.memory_space<vmem>>, vector<256x4xf32>
    tpu.vector_store %arg5[%c0_45, %c12], %22 {strides = array<i32>} : memref<256x40xf32, #tpu.memory_space<vmem>>, vector<256x4xf32>,
    %c0_46 = arith.constant 0 : index
    %c1_47 = arith.constant 1 : index
    %c1_48 = arith.constant 1 : index
    %c0_49 = arith.constant 0 : index
    %24 = vector.load %arg4[%c0_46, %c1_47, %c1_48, %c0_49] : memref<1x18x18x4xf32, #tpu.memory_space<vmem>>, vector<1x16x16x4xf32>
    %25 = vector.shape_cast %24 : vector<1x16x16x4xf32> to vector<256x4xf32>
    %c0_50 = arith.constant 0 : index
    %c16 = arith.constant 16 : index
    %26 = vector.load %arg5[%c0_50, %c16] : memref<256x40xf32, #tpu.memory_space<vmem>>, vector<256x4xf32>
    tpu.vector_store %arg5[%c0_50, %c16], %25 {strides = array<i32>} : memref<256x40xf32, #tpu.memory_space<vmem>>, vector<256x4xf32>,
    %c0_51 = arith.constant 0 : index
    %c1_52 = arith.constant 1 : index
    %c2_53 = arith.constant 2 : index
    %c0_54 = arith.constant 0 : index
    %27 = vector.load %arg4[%c0_51, %c1_52, %c2_53, %c0_54] : memref<1x18x18x4xf32, #tpu.memory_space<vmem>>, vector<1x16x16x4xf32>
    %28 = vector.shape_cast %27 : vector<1x16x16x4xf32> to vector<256x4xf32>
    %c0_55 = arith.constant 0 : index
    %c20 = arith.constant 20 : index
    %29 = vector.load %arg5[%c0_55, %c20] : memref<256x40xf32, #tpu.memory_space<vmem>>, vector<256x4xf32>
    tpu.vector_store %arg5[%c0_55, %c20], %28 {strides = array<i32>} : memref<256x40xf32, #tpu.memory_space<vmem>>, vector<256x4xf32>,
    %c0_56 = arith.constant 0 : index
    %c2_57 = arith.constant 2 : index
    %c0_58 = arith.constant 0 : index
    %c0_59 = arith.constant 0 : index
    %30 = vector.load %arg4[%c0_56, %c2_57, %c0_58, %c0_59] : memref<1x18x18x4xf32, #tpu.memory_space<vmem>>, vector<1x16x16x4xf32>
    %31 = vector.shape_cast %30 : vector<1x16x16x4xf32> to vector<256x4xf32>
    %c0_60 = arith.constant 0 : index
    %c24 = arith.constant 24 : index
    %32 = vector.load %arg5[%c0_60, %c24] : memref<256x40xf32, #tpu.memory_space<vmem>>, vector<256x4xf32>
    tpu.vector_store %arg5[%c0_60, %c24], %31 {strides = array<i32>} : memref<256x40xf32, #tpu.memory_space<vmem>>, vector<256x4xf32>,
    %c0_61 = arith.constant 0 : index
    %c2_62 = arith.constant 2 : index
    %c1_63 = arith.constant 1 : index
    %c0_64 = arith.constant 0 : index
    %33 = vector.load %arg4[%c0_61, %c2_62, %c1_63, %c0_64] : memref<1x18x18x4xf32, #tpu.memory_space<vmem>>, vector<1x16x16x4xf32>
    %34 = vector.shape_cast %33 : vector<1x16x16x4xf32> to vector<256x4xf32>
    %c0_65 = arith.constant 0 : index
    %c28 = arith.constant 28 : index
    %35 = vector.load %arg5[%c0_65, %c28] : memref<256x40xf32, #tpu.memory_space<vmem>>, vector<256x4xf32>
    tpu.vector_store %arg5[%c0_65, %c28], %34 {strides = array<i32>} : memref<256x40xf32, #tpu.memory_space<vmem>>, vector<256x4xf32>,
    %c0_66 = arith.constant 0 : index
    %c2_67 = arith.constant 2 : index
    %c2_68 = arith.constant 2 : index
    %c0_69 = arith.constant 0 : index
    %36 = vector.load %arg4[%c0_66, %c2_67, %c2_68, %c0_69] : memref<1x18x18x4xf32, #tpu.memory_space<vmem>>, vector<1x16x16x4xf32>
    %37 = vector.shape_cast %36 : vector<1x16x16x4xf32> to vector<256x4xf32>
    %c0_70 = arith.constant 0 : index
    %c32 = arith.constant 32 : index
    %38 = vector.load %arg5[%c0_70, %c32] : memref<256x40xf32, #tpu.memory_space<vmem>>, vector<256x4xf32>
    tpu.vector_store %arg5[%c0_70, %c32], %37 {strides = array<i32>} : memref<256x40xf32, #tpu.memory_space<vmem>>, vector<256x4xf32>,
    %c0_71 = arith.constant 0 : index
    %c0_72 = arith.constant 0 : index
    %39 = vector.load %arg5[%c0_71, %c0_72] : memref<256x40xf32, #tpu.memory_space<vmem>>, vector<256x40xf32>
    %c0_73 = arith.constant 0 : index
    %c0_74 = arith.constant 0 : index
    %40 = vector.load %arg2[%c0_73, %c0_74] : memref<40x8xf32, #tpu.memory_space<vmem>>, vector<40x8xf32>
    %cst_75 = arith.constant dense<0.000000e+00> : vector<256x8xf32>
    %41 = tpu.matmul %39, %40, %cst_75 {dimension_numbers = #tpu.dot_dimension_numbers<[1], [0], [0], [1], [0, 0, 1, 1], [], []>} : vector<256x40xf32>, vector<40x8xf32>, vector<256x8xf32> -> vector<256x8xf32>
    %42 = vector.shape_cast %41 : vector<256x8xf32> to vector<1x16x16x8xf32>
    %c0_76 = arith.constant 0 : index
    %c0_77 = arith.constant 0 : index
    %c0_78 = arith.constant 0 : index
    %c0_79 = arith.constant 0 : index
    %43 = vector.load %arg3[%c0_76, %c0_77, %c0_78, %c0_79] : memref<1x16x16x8xf32, #tpu.memory_space<vmem>>, vector<1x16x16x8xf32>
    tpu.vector_store %arg3[%c0_76, %c0_77, %c0_78, %c0_79], %42 {strides = array<i32>} : memref<1x16x16x8xf32, #tpu.memory_space<vmem>>, vector<1x16x16x8xf32>,
    return
  }
  func.func @transform_0(%arg0: i32) -> (i32, i32, i32, i32) {
    %c0_i32 = arith.constant 0 : i32
    %c0_i32_0 = arith.constant 0 : i32
    %c0_i32_1 = arith.constant 0 : i32
    %c0_i32_2 = arith.constant 0 : i32
    return %arg0, %c0_i32, %c0_i32_0, %c0_i32_1 : i32, i32, i32, i32
  }
  func.func @transform_1(%arg0: i32) -> (i32, i32) {
    %c0_i32 = arith.constant 0 : i32
    %c0_i32_0 = arith.constant 0 : i32
    %c0_i32_1 = arith.constant 0 : i32
    return %c0_i32, %c0_i32_0 : i32, i32
  }
  func.func @transform_2(%arg0: i32) -> (i32, i32, i32, i32) {
    %c0_i32 = arith.constant 0 : i32
    %c0_i32_0 = arith.constant 0 : i32
    %c0_i32_1 = arith.constant 0 : i32
    %c0_i32_2 = arith.constant 0 : i32
    return %arg0, %c0_i32, %c0_i32_0, %c0_i32_1 : i32, i32, i32, i32
  }
}

</mosaic_0001>

<llo_original>
// kernel: tpu_custom_call.1
$region0: #{tpu_custom_call.1}
  #allocation0 [shape = 'u32[]', space=smem, size = 0x4, offset = 0x4, fixed_abs, tag = 'smem constant byte address 0x4 - core index']
  #allocation1 [shape = 'u32[144,128]{1,0:T(1,128)}', space=vmem, size = 0x12000, scoped, tag = 'internal scratch']
  #allocation2 [shape = 'f32[1,18,18,4]{3,2,1,0:T(8,128)}', space=vmem, size = 0x36000, scoped, tag = 'scratch operand']
  #allocation3 [shape = 'f32[256,40]{1,0:T(8,128)}', space=vmem, size = 0x20000, scoped, tag = 'scratch operand']
  %s0 = inlined_call_operand.vmem [shape: f32[2,16,16,4], index: 0, kind: input, shape index: {}]
  %s1 = inlined_call_operand.vmem [shape: f32[40,8], index: 1, kind: input, shape index: {}]
  %s2 = inlined_call_operand.vmem [shape: f32[2,16,16,8], index: 2, kind: output, shape index: {}]
  %s3 = sld [smem:[#allocation0]]
  $region41: #{tpu_custom_call.1} parent=0
    _
  %s5 = ssub.s32 1, %s3
  %s6 = scalar_select 0, %s5, %s3
  loop: start=0, step=1, limit=4
  $region2: #{tpu_custom_call.1} parent=0 // loop_pre_header
    _
  $region3: #{tpu_custom_call.1} parent=0 // loop_header
    %s8 = sphi 0, %s12
    %p9 = scmp.ge.s32.totalorder %s8, 4
    %s18 = sphi 0, %s20
    %s21 = sphi 0, %s18
    %s22 = sphi 0, %s21
    %s38 = sphi 0, %s22
    %s42 = sphi 0, %s42
    %s44 = sphi 0, %s42
    %s45 = sphi 0, %s44
    %s59 = sphi 0, %s45
    %s65 = sphi 0, %s67
    %s68 = sphi 0, %s65
    %s69 = sphi 0, %s68
    %s85 = sphi 0, %s69
  $region4: #{tpu_custom_call.1} parent=0 // loop_header_branch
    %11 = sbr.rel (%p9) target = $region8
  $region5: #{tpu_custom_call.1} parent=0 // loop_body
    %s13 = ssub.s32 %s8, 1
    %s14 = ssub.s32 %s8, 2
    %s15 = sadd.s32 %s8, 1
    %s16 = ssub.s32 %s8, %s15
    %p17 = scmp.eq.s32.totalorder %s16, 0
    %s19 = sadd.s32 %s18, 1
    %s20 = scalar_select %p17, %s18, %s19
    %p23 = pneg %p17
    %p24 = scmp.eq.s32.totalorder %s8, 1
    %p25 = por %p23, %p24
    %p26 = scmp.ne.s32.totalorder %s18, %s21
    %p27 = scmp.eq.s32.totalorder %s8, 0
    %p28 = por %p26, %p27
    %p29 = scmp.ne.s32.totalorder %s18, %s21
    %p30 = scmp.eq.s32.totalorder %s13, 1
    %p31 = por %p29, %p30
    %p32 = scmp.ne.s32.totalorder %s21, %s22
    %p33 = scmp.eq.s32.totalorder %s13, 0
    %p34 = por %p32, %p33
    %p35 = scmp.ne.s32.totalorder %s21, %s22
    %p36 = scmp.eq.s32.totalorder %s14, 1
    %p37 = por %p35, %p36
    %p39 = scmp.ne.s32.totalorder %s22, %s38
    %p40 = scmp.eq.s32.totalorder %s14, 0
    %p41 = por %p39, %p40
    %s43 = sadd.s32 %s42, 1
    %p46 = scmp.eq.s32.totalorder %s8, 1
    %p47 = scmp.ne.s32.totalorder %s42, %s44
    %p48 = scmp.eq.s32.totalorder %s8, 0
    %p49 = por %p47, %p48
    %p50 = scmp.ne.s32.totalorder %s42, %s44
    %p51 = scmp.eq.s32.totalorder %s13, 1
    %p52 = por %p50, %p51
    %p53 = scmp.ne.s32.totalorder %s44, %s45
    %p54 = scmp.eq.s32.totalorder %s13, 0
    %p55 = por %p53, %p54
    %p56 = scmp.ne.s32.totalorder %s44, %s45
    %p57 = scmp.eq.s32.totalorder %s14, 1
    %p58 = por %p56, %p57
    %p60 = scmp.ne.s32.totalorder %s45, %s59
    %p61 = scmp.eq.s32.totalorder %s14, 0
    %p62 = por %p60, %p61
    %s63 = ssub.s32 %s8, %s15
    %p64 = scmp.eq.s32.totalorder %s63, 0
    %s66 = sadd.s32 %s65, 1
    %s67 = scalar_select %p64, %s65, %s66
    %p70 = pneg %p64
    %p71 = scmp.eq.s32.totalorder %s8, 1
    %p72 = por %p70, %p71
    %p73 = scmp.ne.s32.totalorder %s65, %s68
    %p74 = scmp.eq.s32.totalorder %s8, 0
    %p75 = por %p73, %p74
    %p76 = scmp.ne.s32.totalorder %s65, %s68
    %p77 = scmp.eq.s32.totalorder %s13, 1
    %p78 = por %p76, %p77
    %p79 = scmp.ne.s32.totalorder %s68, %s69
    %p80 = scmp.eq.s32.totalorder %s13, 0
    %p81 = por %p79, %p80
    %p82 = scmp.ne.s32.totalorder %s68, %s69
    %p83 = scmp.eq.s32.totalorder %s14, 1
    %p84 = por %p82, %p83
    %p86 = scmp.ne.s32.totalorder %s69, %s85
    %p87 = scmp.eq.s32.totalorder %s14, 0
    %p88 = por %p86, %p87
    %p89 = scmp.le.s32.totalorder 1, %s8
    %p90 = scmp.lt.s32.totalorder %s8, 3
    %p91 = pnand %p89, %p90
    %p92 = pneg %p91
    // Predicated region
    $region9: #{tpu_custom_call.1} parent=5 // pred_check
      _
    $region10: #{tpu_custom_call.1} parent=5 // pred_check_branch
      %94 = sbr.rel (%p91) target = $region12
    $region11: #{tpu_custom_call.1} parent=5 // pred_region
      %s95 = ssub.s32 %s8, 1
      // Predicated region
      $region13: #{tpu_custom_call.1} parent=11 // pred_check
        %p96 = pneg %p55
      $region14: #{tpu_custom_call.1} parent=11 // pred_check_branch
        %98 = sbr.rel (%p96) target = $region16
      $region15: #{tpu_custom_call.1} parent=11 // pred_region
        _
      $region16: #{tpu_custom_call.1} parent=11 // pred_fallthru
        _
    $region12: #{tpu_custom_call.1} parent=5 // pred_fallthru
      _
    %p99 = scmp.lt.s32.totalorder %s8, 2
    // Predicated region
    $region17: #{tpu_custom_call.1} parent=5 // pred_check
      %p100 = pneg %p99
    $region18: #{tpu_custom_call.1} parent=5 // pred_check_branch
      %102 = sbr.rel (%p100) target = $region20
    $region19: #{tpu_custom_call.1} parent=5 // pred_region
      // Predicated region
      $region21: #{tpu_custom_call.1} parent=19 // pred_check
        %p103 = pneg %p28
      $region22: #{tpu_custom_call.1} parent=19 // pred_check_branch
        %105 = sbr.rel (%p103) target = $region24
      $region23: #{tpu_custom_call.1} parent=19 // pred_region
        %p106 = scmp.lt.s32.totalorder %s8, 1
        %s107 = scalar_select %p106, %s8, 1
        %s108 = smul.addr %s107, 32
        %s109 = smul.addr %s108, 8
        %s110 = scalar_lea.vmem %s0, %s109
      $region24: #{tpu_custom_call.1} parent=19 // pred_fallthru
        _
    $region20: #{tpu_custom_call.1} parent=5 // pred_fallthru
      _
    %p111 = scmp.le.s32.totalorder 1, %s8
    %p112 = scmp.lt.s32.totalorder %s8, 3
    %p113 = pnand %p111, %p112
    %p114 = pneg %p113
    // Predicated region
    $region25: #{tpu_custom_call.1} parent=5 // pred_check
      _
    $region26: #{tpu_custom_call.1} parent=5 // pred_check_branch
      %116 = sbr.rel (%p113) target = $region28
    $region27: #{tpu_custom_call.1} parent=5 // pred_region
      %s117 = ssub.s32 %s8, 1
      %p118 = scmp.lt.s32.totalorder %s13, 1
      %s119 = scalar_select %p118, %s13, 1
      %s120 = smul.addr %s119, 32
      %s121 = smul.addr %s120, 8
      %s122 = scalar_lea.vmem %s0, %s121
      %p123 = pneg %p34
      %p124 = pneg %p31
      %p125 = pneg %p55
      %p126 = pneg %p52
      %p127 = pneg %p81
      %p128 = pneg %p78
      %p129 = scmp.lt.s32.totalorder %s13, 1
      %s130 = scalar_select %p129, %s13, 1
      %s131 = smul.addr %s130, 32
      %s132 = smul.addr %s131, 8
      %s133 = scalar_lea.vmem %s2, %s132
      %p134 = scmp.lt.s32.totalorder %s13, 1
      %s135 = scalar_select %p134, %s13, 1
      %s136 = smul.addr %s135, 32
      %s137 = smul.addr %s136, 8
      %s138 = scalar_lea.vmem %s0, %s137
      %p139 = scmp.lt.s32.totalorder %s13, 1
      %s140 = scalar_select %p139, %s13, 1
      %s141 = smul.addr %s140, 32
      %s142 = smul.addr %s141, 8
      %s143 = scalar_lea.vmem %s2, %s142
      %vm144 = vcmask 31744
      %145 = vst.msk [vmem:[#allocation2] sm:$0xff] %vm144, 0.0
      %146 = vst.msk [vmem:[#allocation2 + $0x8] sm:$0xff] %vm144, 0.0
      %vm147 = vcmask 25600
      %148 = vst.msk [vmem:[#allocation2 + $0x10] sm:$0x3] %vm147, 0.0
      %s149 = scalar_lea.vmem [#allocation2], 408
      %150 = vst.msk [vmem:[%s149] sm:$0xff] %vm144, 0.0
      %151 = vst.msk [vmem:[%s149 + $0x8] sm:$0xff] %vm144, 0.0
      %152 = vst.msk [vmem:[%s149 + $0x10] sm:$0x3] %vm147, 0.0
      %s153 = scalar_lea.vmem [#allocation2], 24
      %vm154 = vcmask 24576
      %155 = vst.msk [vmem:[%s153] sm:$0x1] %vm154, 0.0
      %156 = vst.msk [vmem:[%s153 + $0x18] sm:$0x1] %vm154, 0.0
      %157 = vst.msk [vmem:[%s153 + $0x30] sm:$0x1] %vm154, 0.0
      %158 = vst.msk [vmem:[%s153 + $0x48] sm:$0x1] %vm154, 0.0
      %159 = vst.msk [vmem:[%s153 + $0x60] sm:$0x1] %vm154, 0.0
      %160 = vst.msk [vmem:[%s153 + $0x78] sm:$0x1] %vm154, 0.0
      %161 = vst.msk [vmem:[%s153 + $0x90] sm:$0x1] %vm154, 0.0
      %162 = vst.msk [vmem:[%s153 + $0xa8] sm:$0x1] %vm154, 0.0
      %163 = vst.msk [vmem:[%s153 + $0xc0] sm:$0x1] %vm154, 0.0
      %164 = vst.msk [vmem:[%s153 + $0xd8] sm:$0x1] %vm154, 0.0
      %165 = vst.msk [vmem:[%s153 + $0xf0] sm:$0x1] %vm154, 0.0
      %166 = vst.msk [vmem:[%s153 + $0x108] sm:$0x1] %vm154, 0.0
      %167 = vst.msk [vmem:[%s153 + $0x120] sm:$0x1] %vm154, 0.0
      %168 = vst.msk [vmem:[%s153 + $0x138] sm:$0x1] %vm154, 0.0
      %169 = vst.msk [vmem:[%s153 + $0x150] sm:$0x1] %vm154, 0.0
      %170 = vst.msk [vmem:[%s153 + $0x168] sm:$0x1] %vm154, 0.0
      %171 = vst.msk [vmem:[%s153 + $0x11] sm:$0x1] %vm154, 0.0
      %172 = vst.msk [vmem:[%s153 + $0x29] sm:$0x1] %vm154, 0.0
      %173 = vst.msk [vmem:[%s153 + $0x41] sm:$0x1] %vm154, 0.0
      %174 = vst.msk [vmem:[%s153 + $0x59] sm:$0x1] %vm154, 0.0
      %175 = vst.msk [vmem:[%s153 + $0x71] sm:$0x1] %vm154, 0.0
      %176 = vst.msk [vmem:[%s153 + $0x89] sm:$0x1] %vm154, 0.0
      %177 = vst.msk [vmem:[%s153 + $0xa1] sm:$0x1] %vm154, 0.0
      %178 = vst.msk [vmem:[%s153 + $0xb9] sm:$0x1] %vm154, 0.0
      %179 = vst.msk [vmem:[%s153 + $0xd1] sm:$0x1] %vm154, 0.0
      %180 = vst.msk [vmem:[%s153 + $0xe9] sm:$0x1] %vm154, 0.0
      %181 = vst.msk [vmem:[%s153 + $0x101] sm:$0x1] %vm154, 0.0
      %182 = vst.msk [vmem:[%s153 + $0x119] sm:$0x1] %vm154, 0.0
      %183 = vst.msk [vmem:[%s153 + $0x131] sm:$0x1] %vm154, 0.0
      %184 = vst.msk [vmem:[%s153 + $0x149] sm:$0x1] %vm154, 0.0
      %185 = vst.msk [vmem:[%s153 + $0x161] sm:$0x1] %vm154, 0.0
      %186 = vst.msk [vmem:[%s153 + $0x179] sm:$0x1] %vm154, 0.0
      %v187 = vld [vmem:[%s138] sm:$0xff]
      %v188 = vld [vmem:[%s138 + $0x8] sm:$0xff]
      %v189 = vld [vmem:[%s138 + $0x10] sm:$0xff]
      %v190 = vld [vmem:[%s138 + $0x18] sm:$0xff]
      %v191 = vld [vmem:[%s138 + $0x20] sm:$0xff]
      %v192 = vld [vmem:[%s138 + $0x28] sm:$0xff]
      %v193 = vld [vmem:[%s138 + $0x30] sm:$0xff]
      %v194 = vld [vmem:[%s138 + $0x38] sm:$0xff]
      %v195 = vld [vmem:[%s138 + $0x40] sm:$0xff]
      %v196 = vld [vmem:[%s138 + $0x48] sm:$0xff]
      %v197 = vld [vmem:[%s138 + $0x50] sm:$0xff]
      %v198 = vld [vmem:[%s138 + $0x58] sm:$0xff]
      %v199 = vld [vmem:[%s138 + $0x60] sm:$0xff]
      %v200 = vld [vmem:[%s138 + $0x68] sm:$0xff]
      %v201 = vld [vmem:[%s138 + $0x70] sm:$0xff]
      %v202 = vld [vmem:[%s138 + $0x78] sm:$0xff]
      %v203 = vld [vmem:[%s138 + $0x80] sm:$0xff]
      %v204 = vld [vmem:[%s138 + $0x88] sm:$0xff]
      %v205 = vld [vmem:[%s138 + $0x90] sm:$0xff]
      %v206 = vld [vmem:[%s138 + $0x98] sm:$0xff]
      %v207 = vld [vmem:[%s138 + $0xa0] sm:$0xff]
      %v208 = vld [vmem:[%s138 + $0xa8] sm:$0xff]
      %v209 = vld [vmem:[%s138 + $0xb0] sm:$0xff]
      %v210 = vld [vmem:[%s138 + $0xb8] sm:$0xff]
      %v211 = vld [vmem:[%s138 + $0xc0] sm:$0xff]
      %v212 = vld [vmem:[%s138 + $0xc8] sm:$0xff]
      %v213 = vld [vmem:[%s138 + $0xd0] sm:$0xff]
      %v214 = vld [vmem:[%s138 + $0xd8] sm:$0xff]
      %v215 = vld [vmem:[%s138 + $0xe0] sm:$0xff]
      %v216 = vld [vmem:[%s138 + $0xe8] sm:$0xff]
      %v217 = vld [vmem:[%s138 + $0xf0] sm:$0xff]
      %v218 = vld [vmem:[%s138 + $0xf8] sm:$0xff]
      %219 = vst.msk [vmem:[%s153 + $0x1] sm:$0xff] %vm144, %v187
      %220 = vst.msk [vmem:[%s153 + $0x9] sm:$0xff] %vm144, %v188
      %221 = vst.msk [vmem:[%s153 + $0x19] sm:$0xff] %vm144, %v189
      %222 = vst.msk [vmem:[%s153 + $0x21] sm:$0xff] %vm144, %v190
      %223 = vst.msk [vmem:[%s153 + $0x31] sm:$0xff] %vm144, %v191
      %224 = vst.msk [vmem:[%s153 + $0x39] sm:$0xff] %vm144, %v192
      %225 = vst.msk [vmem:[%s153 + $0x49] sm:$0xff] %vm144, %v193
      %226 = vst.msk [vmem:[%s153 + $0x51] sm:$0xff] %vm144, %v194
      %227 = vst.msk [vmem:[%s153 + $0x61] sm:$0xff] %vm144, %v195
      %228 = vst.msk [vmem:[%s153 + $0x69] sm:$0xff] %vm144, %v196
      %229 = vst.msk [vmem:[%s153 + $0x79] sm:$0xff] %vm144, %v197
      %230 = vst.msk [vmem:[%s153 + $0x81] sm:$0xff] %vm144, %v198
      %231 = vst.msk [vmem:[%s153 + $0x91] sm:$0xff] %vm144, %v199
      %232 = vst.msk [vmem:[%s153 + $0x99] sm:$0xff] %vm144, %v200
      %233 = vst.msk [vmem:[%s153 + $0xa9] sm:$0xff] %vm144, %v201
      %234 = vst.msk [vmem:[%s153 + $0xb1] sm:$0xff] %vm144, %v202
      %235 = vst.msk [vmem:[%s153 + $0xc1] sm:$0xff] %vm144, %v203
      %236 = vst.msk [vmem:[%s153 + $0xc9] sm:$0xff] %vm144, %v204
      %237 = vst.msk [vmem:[%s153 + $0xd9] sm:$0xff] %vm144, %v205
      %238 = vst.msk [vmem:[%s153 + $0xe1] sm:$0xff] %vm144, %v206
      %239 = vst.msk [vmem:[%s153 + $0xf1] sm:$0xff] %vm144, %v207
      %240 = vst.msk [vmem:[%s153 + $0xf9] sm:$0xff] %vm144, %v208
      %241 = vst.msk [vmem:[%s153 + $0x109] sm:$0xff] %vm144, %v209
      %242 = vst.msk [vmem:[%s153 + $0x111] sm:$0xff] %vm144, %v210
      %243 = vst.msk [vmem:[%s153 + $0x121] sm:$0xff] %vm144, %v211
      %244 = vst.msk [vmem:[%s153 + $0x129] sm:$0xff] %vm144, %v212
      %245 = vst.msk [vmem:[%s153 + $0x139] sm:$0xff] %vm144, %v213
      %246 = vst.msk [vmem:[%s153 + $0x141] sm:$0xff] %vm144, %v214
      %247 = vst.msk [vmem:[%s153 + $0x151] sm:$0xff] %vm144, %v215
      %248 = vst.msk [vmem:[%s153 + $0x159] sm:$0xff] %vm144, %v216
      %249 = vst.msk [vmem:[%s153 + $0x169] sm:$0xff] %vm144, %v217
      %250 = vst.msk [vmem:[%s153 + $0x171] sm:$0xff] %vm144, %v218
      %vm251 = vcmask 326944
      %252 = vst.msk [vmem:[#allocation3] sm:$0xff] %vm251, 0.0
      %253 = vst.msk [vmem:[#allocation3 + $0x8] sm:$0xff] %vm251, 0.0
      %254 = vst.msk [vmem:[#allocation3 + $0x10] sm:$0xff] %vm251, 0.0
      %255 = vst.msk [vmem:[#allocation3 + $0x18] sm:$0xff] %vm251, 0.0
      %256 = vst.msk [vmem:[#allocation3 + $0x20] sm:$0xff] %vm251, 0.0
      %257 = vst.msk [vmem:[#allocation3 + $0x28] sm:$0xff] %vm251, 0.0
      %258 = vst.msk [vmem:[#allocation3 + $0x30] sm:$0xff] %vm251, 0.0
      %259 = vst.msk [vmem:[#allocation3 + $0x38] sm:$0xff] %vm251, 0.0
      %260 = vst.msk [vmem:[#allocation3 + $0x40] sm:$0xff] %vm251, 0.0
      %261 = vst.msk [vmem:[#allocation3 + $0x48] sm:$0xff] %vm251, 0.0
      %262 = vst.msk [vmem:[#allocation3 + $0x50] sm:$0xff] %vm251, 0.0
      %263 = vst.msk [vmem:[#allocation3 + $0x58] sm:$0xff] %vm251, 0.0
      %264 = vst.msk [vmem:[#allocation3 + $0x60] sm:$0xff] %vm251, 0.0
      %265 = vst.msk [vmem:[#allocation3 + $0x68] sm:$0xff] %vm251, 0.0
      %266 = vst.msk [vmem:[#allocation3 + $0x70] sm:$0xff] %vm251, 0.0
      %267 = vst.msk [vmem:[#allocation3 + $0x78] sm:$0xff] %vm251, 0.0
      %268 = vst.msk [vmem:[#allocation3 + $0x80] sm:$0xff] %vm251, 0.0
      %269 = vst.msk [vmem:[#allocation3 + $0x88] sm:$0xff] %vm251, 0.0
      %270 = vst.msk [vmem:[#allocation3 + $0x90] sm:$0xff] %vm251, 0.0
      %271 = vst.msk [vmem:[#allocation3 + $0x98] sm:$0xff] %vm251, 0.0
      %272 = vst.msk [vmem:[#allocation3 + $0xa0] sm:$0xff] %vm251, 0.0
      %273 = vst.msk [vmem:[#allocation3 + $0xa8] sm:$0xff] %vm251, 0.0
      %274 = vst.msk [vmem:[#allocation3 + $0xb0] sm:$0xff] %vm251, 0.0
      %275 = vst.msk [vmem:[#allocation3 + $0xb8] sm:$0xff] %vm251, 0.0
      %276 = vst.msk [vmem:[#allocation3 + $0xc0] sm:$0xff] %vm251, 0.0
      %277 = vst.msk [vmem:[#allocation3 + $0xc8] sm:$0xff] %vm251, 0.0
      %278 = vst.msk [vmem:[#allocation3 + $0xd0] sm:$0xff] %vm251, 0.0
      %279 = vst.msk [vmem:[#allocation3 + $0xd8] sm:$0xff] %vm251, 0.0
      %280 = vst.msk [vmem:[#allocation3 + $0xe0] sm:$0xff] %vm251, 0.0
      %281 = vst.msk [vmem:[#allocation3 + $0xe8] sm:$0xff] %vm251, 0.0
      %282 = vst.msk [vmem:[#allocation3 + $0xf0] sm:$0xff] %vm251, 0.0
      %283 = vst.msk [vmem:[#allocation3 + $0xf8] sm:$0xff] %vm251, 0.0
      %v284 = vld [vmem:[#allocation2] sm:$0xff]
      %v285 = vld [vmem:[#allocation2 + $0x8] sm:$0xff]
      %v286 = vld [vmem:[#allocation2 + $0x18] sm:$0xff]
      %v287 = vld [vmem:[#allocation2 + $0x20] sm:$0xff]
      %v288 = vld [vmem:[#allocation2 + $0x30] sm:$0xff]
      %v289 = vld [vmem:[#allocation2 + $0x38] sm:$0xff]
      %v290 = vld [vmem:[#allocation2 + $0x48] sm:$0xff]
      %v291 = vld [vmem:[#allocation2 + $0x50] sm:$0xff]
      %v292 = vld [vmem:[#allocation2 + $0x60] sm:$0xff]
      %v293 = vld [vmem:[#allocation2 + $0x68] sm:$0xff]
      %v294 = vld [vmem:[#allocation2 + $0x78] sm:$0xff]
      %v295 = vld [vmem:[#allocation2 + $0x80] sm:$0xff]
      %v296 = vld [vmem:[#allocation2 + $0x90] sm:$0xff]
      %v297 = vld [vmem:[#allocation2 + $0x98] sm:$0xff]
      %v298 = vld [vmem:[#allocation2 + $0xa8] sm:$0xff]
      %v299 = vld [vmem:[#allocation2 + $0xb0] sm:$0xff]
      %v300 = vld [vmem:[#allocation2 + $0xc0] sm:$0xff]
      %v301 = vld [vmem:[#allocation2 + $0xc8] sm:$0xff]
      %v302 = vld [vmem:[#allocation2 + $0xd8] sm:$0xff]
      %v303 = vld [vmem:[#allocation2 + $0xe0] sm:$0xff]
      %v304 = vld [vmem:[#allocation2 + $0xf0] sm:$0xff]
      %v305 = vld [vmem:[#allocation2 + $0xf8] sm:$0xff]
      %v306 = vld [vmem:[#allocation2 + $0x108] sm:$0xff]
      %v307 = vld [vmem:[#allocation2 + $0x110] sm:$0xff]
      %v308 = vld [vmem:[#allocation2 + $0x120] sm:$0xff]
      %v309 = vld [vmem:[#allocation2 + $0x128] sm:$0xff]
      %v310 = vld [vmem:[#allocation2 + $0x138] sm:$0xff]
      %v311 = vld [vmem:[#allocation2 + $0x140] sm:$0xff]
      %v312 = vld [vmem:[#allocation2 + $0x150] sm:$0xff]
      %v313 = vld [vmem:[#allocation2 + $0x158] sm:$0xff]
      %v314 = vld [vmem:[#allocation2 + $0x168] sm:$0xff]
      %v315 = vld [vmem:[#allocation2 + $0x170] sm:$0xff]
      %316 = vst.msk [vmem:[#allocation3] sm:$0xff] %vm144, %v284
      %317 = vst.msk [vmem:[#allocation3 + $0x8] sm:$0xff] %vm144, %v285
      %318 = vst.msk [vmem:[#allocation3 + $0x10] sm:$0xff] %vm144, %v286
      %319 = vst.msk [vmem:[#allocation3 + $0x18] sm:$0xff] %vm144, %v287
      %320 = vst.msk [vmem:[#allocation3 + $0x20] sm:$0xff] %vm144, %v288
      %321 = vst.msk [vmem:[#allocation3 + $0x28] sm:$0xff] %vm144, %v289
      %322 = vst.msk [vmem:[#allocation3 + $0x30] sm:$0xff] %vm144, %v290
      %323 = vst.msk [vmem:[#allocation3 + $0x38] sm:$0xff] %vm144, %v291
      %324 = vst.msk [vmem:[#allocation3 + $0x40] sm:$0xff] %vm144, %v292
      %325 = vst.msk [vmem:[#allocation3 + $0x48] sm:$0xff] %vm144, %v293
      %326 = vst.msk [vmem:[#allocation3 + $0x50] sm:$0xff] %vm144, %v294
      %327 = vst.msk [vmem:[#allocation3 + $0x58] sm:$0xff] %vm144, %v295
      %328 = vst.msk [vmem:[#allocation3 + $0x60] sm:$0xff] %vm144, %v296
      %329 = vst.msk [vmem:[#allocation3 + $0x68] sm:$0xff] %vm144, %v297
      %330 = vst.msk [vmem:[#allocation3 + $0x70] sm:$0xff] %vm144, %v298
      %331 = vst.msk [vmem:[#allocation3 + $0x78] sm:$0xff] %vm144, %v299
      %332 = vst.msk [vmem:[#allocation3 + $0x80] sm:$0xff] %vm144, %v300
      %333 = vst.msk [vmem:[#allocation3 + $0x88] sm:$0xff] %vm144, %v301
      %334 = vst.msk [vmem:[#allocation3 + $0x90] sm:$0xff] %vm144, %v302
      %335 = vst.msk [vmem:[#allocation3 + $0x98] sm:$0xff] %vm144, %v303
      %336 = vst.msk [vmem:[#allocation3 + $0xa0] sm:$0xff] %vm144, %v304
      %337 = vst.msk [vmem:[#allocation3 + $0xa8] sm:$0xff] %vm144, %v305
      %338 = vst.msk [vmem:[#allocation3 + $0xb0] sm:$0xff] %vm144, %v306
      %339 = vst.msk [vmem:[#allocation3 + $0xb8] sm:$0xff] %vm144, %v307
      %340 = vst.msk [vmem:[#allocation3 + $0xc0] sm:$0xff] %vm144, %v308
      %341 = vst.msk [vmem:[#allocation3 + $0xc8] sm:$0xff] %vm144, %v309
      %342 = vst.msk [vmem:[#allocation3 + $0xd0] sm:$0xff] %vm144, %v310
      %343 = vst.msk [vmem:[#allocation3 + $0xd8] sm:$0xff] %vm144, %v311
      %344 = vst.msk [vmem:[#allocation3 + $0xe0] sm:$0xff] %vm144, %v312
      %345 = vst.msk [vmem:[#allocation3 + $0xe8] sm:$0xff] %vm144, %v313
      %346 = vst.msk [vmem:[#allocation3 + $0xf0] sm:$0xff] %vm144, %v314
      %347 = vst.msk [vmem:[#allocation3 + $0xf8] sm:$0xff] %vm144, %v315
      %v348 = vld [vmem:[#allocation2 + $0x1] sm:$0xff]
      %v349 = vld [vmem:[#allocation2 + $0x9] sm:$0xff]
      %v350 = vld [vmem:[#allocation2 + $0x19] sm:$0xff]
      %v351 = vld [vmem:[#allocation2 + $0x21] sm:$0xff]
      %v352 = vld [vmem:[#allocation2 + $0x31] sm:$0xff]
      %v353 = vld [vmem:[#allocation2 + $0x39] sm:$0xff]
      %v354 = vld [vmem:[#allocation2 + $0x49] sm:$0xff]
      %v355 = vld [vmem:[#allocation2 + $0x51] sm:$0xff]
      %v356 = vld [vmem:[#allocation2 + $0x61] sm:$0xff]
      %v357 = vld [vmem:[#allocation2 + $0x69] sm:$0xff]
      %v358 = vld [vmem:[#allocation2 + $0x79] sm:$0xff]
      %v359 = vld [vmem:[#allocation2 + $0x81] sm:$0xff]
      %v360 = vld [vmem:[#allocation2 + $0x91] sm:$0xff]
      %v361 = vld [vmem:[#allocation2 + $0x99] sm:$0xff]
      %v362 = vld [vmem:[#allocation2 + $0xa9] sm:$0xff]
      %v363 = vld [vmem:[#allocation2 + $0xb1] sm:$0xff]
      %v364 = vld [vmem:[#allocation2 + $0xc1] sm:$0xff]
      %v365 = vld [vmem:[#allocation2 + $0xc9] sm:$0xff]
      %v366 = vld [vmem:[#allocation2 + $0xd9] sm:$0xff]
      %v367 = vld [vmem:[#allocation2 + $0xe1] sm:$0xff]
      %v368 = vld [vmem:[#allocation2 + $0xf1] sm:$0xff]
      %v369 = vld [vmem:[#allocation2 + $0xf9] sm:$0xff]
      %v370 = vld [vmem:[#allocation2 + $0x109] sm:$0xff]
      %v371 = vld [vmem:[#allocation2 + $0x111] sm:$0xff]
      %v372 = vld [vmem:[#allocation2 + $0x121] sm:$0xff]
      %v373 = vld [vmem:[#allocation2 + $0x129] sm:$0xff]
      %v374 = vld [vmem:[#allocation2 + $0x139] sm:$0xff]
      %v375 = vld [vmem:[#allocation2 + $0x141] sm:$0xff]
      %v376 = vld [vmem:[#allocation2 + $0x151] sm:$0xff]
      %v377 = vld [vmem:[#allocation2 + $0x159] sm:$0xff]
      %v378 = vld [vmem:[#allocation2 + $0x169] sm:$0xff]
      %v379 = vld [vmem:[#allocation2 + $0x171] sm:$0xff]
      %412 = vrot.lane.b32.xlu0 %v348, 4
      %v413 = vpop.permute.xlu0 %412
      %414 = vrot.lane.b32.xlu0 %v349, 4
      %v415 = vpop.permute.xlu0 %414
      %416 = vrot.lane.b32.xlu0 %v350, 4
      %v417 = vpop.permute.xlu0 %416
      %418 = vrot.lane.b32.xlu0 %v351, 4
      %v419 = vpop.permute.xlu0 %418
      %420 = vrot.lane.b32.xlu0 %v352, 4
      %v421 = vpop.permute.xlu0 %420
      %422 = vrot.lane.b32.xlu0 %v353, 4
      %v423 = vpop.permute.xlu0 %422
      %424 = vrot.lane.b32.xlu0 %v354, 4
      %v425 = vpop.permute.xlu0 %424
      %426 = vrot.lane.b32.xlu0 %v355, 4
      %v427 = vpop.permute.xlu0 %426
      %428 = vrot.lane.b32.xlu0 %v356, 4
      %v429 = vpop.permute.xlu0 %428
      %430 = vrot.lane.b32.xlu0 %v357, 4
      %v431 = vpop.permute.xlu0 %430
      %432 = vrot.lane.b32.xlu0 %v358, 4
      %v433 = vpop.permute.xlu0 %432
      %434 = vrot.lane.b32.xlu0 %v359, 4
      %v435 = vpop.permute.xlu0 %434
      %436 = vrot.lane.b32.xlu0 %v360, 4
      %v437 = vpop.permute.xlu0 %436
      %438 = vrot.lane.b32.xlu0 %v361, 4
      %v439 = vpop.permute.xlu0 %438
      %440 = vrot.lane.b32.xlu0 %v362, 4
      %v441 = vpop.permute.xlu0 %440
      %442 = vrot.lane.b32.xlu0 %v363, 4
      %v443 = vpop.permute.xlu0 %442
      %444 = vrot.lane.b32.xlu0 %v364, 4
      %v445 = vpop.permute.xlu0 %444
      %446 = vrot.lane.b32.xlu0 %v365, 4
      %v447 = vpop.permute.xlu0 %446
      %448 = vrot.lane.b32.xlu0 %v366, 4
      %v449 = vpop.permute.xlu0 %448
      %450 = vrot.lane.b32.xlu0 %v367, 4
      %v451 = vpop.permute.xlu0 %450
      %452 = vrot.lane.b32.xlu0 %v368, 4
      %v453 = vpop.permute.xlu0 %452
      %454 = vrot.lane.b32.xlu0 %v369, 4
      %v455 = vpop.permute.xlu0 %454
      %456 = vrot.lane.b32.xlu0 %v370, 4
      %v457 = vpop.permute.xlu0 %456
      %458 = vrot.lane.b32.xlu0 %v371, 4
      %v459 = vpop.permute.xlu0 %458
      %460 = vrot.lane.b32.xlu0 %v372, 4
      %v461 = vpop.permute.xlu0 %460
      %462 = vrot.lane.b32.xlu0 %v373, 4
      %v463 = vpop.permute.xlu0 %462
      %464 = vrot.lane.b32.xlu0 %v374, 4
      %v465 = vpop.permute.xlu0 %464
      %466 = vrot.lane.b32.xlu0 %v375, 4
      %v467 = vpop.permute.xlu0 %466
      %468 = vrot.lane.b32.xlu0 %v376, 4
      %v469 = vpop.permute.xlu0 %468
      %470 = vrot.lane.b32.xlu0 %v377, 4
      %v471 = vpop.permute.xlu0 %470
      %472 = vrot.lane.b32.xlu0 %v378, 4
      %v473 = vpop.permute.xlu0 %472
      %474 = vrot.lane.b32.xlu0 %v379, 4
      %v475 = vpop.permute.xlu0 %474
      %vm508 = vcmask 64544
      %509 = vst.msk [vmem:[#allocation3] sm:$0xff] %vm508, %v413
      %510 = vst.msk [vmem:[#allocation3 + $0x8] sm:$0xff] %vm508, %v415
      %511 = vst.msk [vmem:[#allocation3 + $0x10] sm:$0xff] %vm508, %v417
      %512 = vst.msk [vmem:[#allocation3 + $0x18] sm:$0xff] %vm508, %v419
      %513 = vst.msk [vmem:[#allocation3 + $0x20] sm:$0xff] %vm508, %v421
      %514 = vst.msk [vmem:[#allocation3 + $0x28] sm:$0xff] %vm508, %v423
      %515 = vst.msk [vmem:[#allocation3 + $0x30] sm:$0xff] %vm508, %v425
      %516 = vst.msk [vmem:[#allocation3 + $0x38] sm:$0xff] %vm508, %v427
      %517 = vst.msk [vmem:[#allocation3 + $0x40] sm:$0xff] %vm508, %v429
      %518 = vst.msk [vmem:[#allocation3 + $0x48] sm:$0xff] %vm508, %v431
      %519 = vst.msk [vmem:[#allocation3 + $0x50] sm:$0xff] %vm508, %v433
      %520 = vst.msk [vmem:[#allocation3 + $0x58] sm:$0xff] %vm508, %v435
      %521 = vst.msk [vmem:[#allocation3 + $0x60] sm:$0xff] %vm508, %v437
      %522 = vst.msk [vmem:[#allocation3 + $0x68] sm:$0xff] %vm508, %v439
      %523 = vst.msk [vmem:[#allocation3 + $0x70] sm:$0xff] %vm508, %v441
      %524 = vst.msk [vmem:[#allocation3 + $0x78] sm:$0xff] %vm508, %v443
      %525 = vst.msk [vmem:[#allocation3 + $0x80] sm:$0xff] %vm508, %v445
      %526 = vst.msk [vmem:[#allocation3 + $0x88] sm:$0xff] %vm508, %v447
      %527 = vst.msk [vmem:[#allocation3 + $0x90] sm:$0xff] %vm508, %v449
      %528 = vst.msk [vmem:[#allocation3 + $0x98] sm:$0xff] %vm508, %v451
      %529 = vst.msk [vmem:[#allocation3 + $0xa0] sm:$0xff] %vm508, %v453
      %530 = vst.msk [vmem:[#allocation3 + $0xa8] sm:$0xff] %vm508, %v455
      %531 = vst.msk [vmem:[#allocation3 + $0xb0] sm:$0xff] %vm508, %v457
      %532 = vst.msk [vmem:[#allocation3 + $0xb8] sm:$0xff] %vm508, %v459
      %533 = vst.msk [vmem:[#allocation3 + $0xc0] sm:$0xff] %vm508, %v461
      %534 = vst.msk [vmem:[#allocation3 + $0xc8] sm:$0xff] %vm508, %v463
      %535 = vst.msk [vmem:[#allocation3 + $0xd0] sm:$0xff] %vm508, %v465
      %536 = vst.msk [vmem:[#allocation3 + $0xd8] sm:$0xff] %vm508, %v467
      %537 = vst.msk [vmem:[#allocation3 + $0xe0] sm:$0xff] %vm508, %v469
      %538 = vst.msk [vmem:[#allocation3 + $0xe8] sm:$0xff] %vm508, %v471
      %539 = vst.msk [vmem:[#allocation3 + $0xf0] sm:$0xff] %vm508, %v473
      %540 = vst.msk [vmem:[#allocation3 + $0xf8] sm:$0xff] %vm508, %v475
      %v541 = vld [vmem:[#allocation2 + $0x2] sm:$0xff]
      %v542 = vld [vmem:[#allocation2 + $0xa] sm:$0xff]
      %v543 = vld [vmem:[#allocation2 + $0x1a] sm:$0xff]
      %v544 = vld [vmem:[#allocation2 + $0x22] sm:$0xff]
      %v545 = vld [vmem:[#allocation2 + $0x32] sm:$0xff]
      %v546 = vld [vmem:[#allocation2 + $0x3a] sm:$0xff]
      %v547 = vld [vmem:[#allocation2 + $0x4a] sm:$0xff]
      %v548 = vld [vmem:[#allocation2 + $0x52] sm:$0xff]
      %v549 = vld [vmem:[#allocation2 + $0x62] sm:$0xff]
      %v550 = vld [vmem:[#allocation2 + $0x6a] sm:$0xff]
      %v551 = vld [vmem:[#allocation2 + $0x7a] sm:$0xff]
      %v552 = vld [vmem:[#allocation2 + $0x82] sm:$0xff]
      %v553 = vld [vmem:[#allocation2 + $0x92] sm:$0xff]
      %v554 = vld [vmem:[#allocation2 + $0x9a] sm:$0xff]
      %v555 = vld [vmem:[#allocation2 + $0xaa] sm:$0xff]
      %v556 = vld [vmem:[#allocation2 + $0xb2] sm:$0xff]
      %v557 = vld [vmem:[#allocation2 + $0xc2] sm:$0xff]
      %v558 = vld [vmem:[#allocation2 + $0xca] sm:$0xff]
      %v559 = vld [vmem:[#allocation2 + $0xda] sm:$0xff]
      %v560 = vld [vmem:[#allocation2 + $0xe2] sm:$0xff]
      %v561 = vld [vmem:[#allocation2 + $0xf2] sm:$0xff]
      %v562 = vld [vmem:[#allocation2 + $0xfa] sm:$0xff]
      %v563 = vld [vmem:[#allocation2 + $0x10a] sm:$0xff]
      %v564 = vld [vmem:[#allocation2 + $0x112] sm:$0xff]
      %v565 = vld [vmem:[#allocation2 + $0x122] sm:$0xff]
      %v566 = vld [vmem:[#allocation2 + $0x12a] sm:$0xff]
      %v567 = vld [vmem:[#allocation2 + $0x13a] sm:$0xff]
      %v568 = vld [vmem:[#allocation2 + $0x142] sm:$0xff]
      %v569 = vld [vmem:[#allocation2 + $0x152] sm:$0xff]
      %v570 = vld [vmem:[#allocation2 + $0x15a] sm:$0xff]
      %v571 = vld [vmem:[#allocation2 + $0x16a] sm:$0xff]
      %v572 = vld [vmem:[#allocation2 + $0x172] sm:$0xff]
      %605 = vrot.lane.b32.xlu0 %v541, 8
      %v606 = vpop.permute.xlu0 %605
      %607 = vrot.lane.b32.xlu0 %v542, 8
      %v608 = vpop.permute.xlu0 %607
      %609 = vrot.lane.b32.xlu0 %v543, 8
      %v610 = vpop.permute.xlu0 %609
      %611 = vrot.lane.b32.xlu0 %v544, 8
      %v612 = vpop.permute.xlu0 %611
      %613 = vrot.lane.b32.xlu0 %v545, 8
      %v614 = vpop.permute.xlu0 %613
      %615 = vrot.lane.b32.xlu0 %v546, 8
      %v616 = vpop.permute.xlu0 %615
      %617 = vrot.lane.b32.xlu0 %v547, 8
      %v618 = vpop.permute.xlu0 %617
      %619 = vrot.lane.b32.xlu0 %v548, 8
      %v620 = vpop.permute.xlu0 %619
      %621 = vrot.lane.b32.xlu0 %v549, 8
      %v622 = vpop.permute.xlu0 %621
      %623 = vrot.lane.b32.xlu0 %v550, 8
      %v624 = vpop.permute.xlu0 %623
      %625 = vrot.lane.b32.xlu0 %v551, 8
      %v626 = vpop.permute.xlu0 %625
      %627 = vrot.lane.b32.xlu0 %v552, 8
      %v628 = vpop.permute.xlu0 %627
      %629 = vrot.lane.b32.xlu0 %v553, 8
      %v630 = vpop.permute.xlu0 %629
      %631 = vrot.lane.b32.xlu0 %v554, 8
      %v632 = vpop.permute.xlu0 %631
      %633 = vrot.lane.b32.xlu0 %v555, 8
      %v634 = vpop.permute.xlu0 %633
      %635 = vrot.lane.b32.xlu0 %v556, 8
      %v636 = vpop.permute.xlu0 %635
      %637 = vrot.lane.b32.xlu0 %v557, 8
      %v638 = vpop.permute.xlu0 %637
      %639 = vrot.lane.b32.xlu0 %v558, 8
      %v640 = vpop.permute.xlu0 %639
      %641 = vrot.lane.b32.xlu0 %v559, 8
      %v642 = vpop.permute.xlu0 %641
      %643 = vrot.lane.b32.xlu0 %v560, 8
      %v644 = vpop.permute.xlu0 %643
      %645 = vrot.lane.b32.xlu0 %v561, 8
      %v646 = vpop.permute.xlu0 %645
      %647 = vrot.lane.b32.xlu0 %v562, 8
      %v648 = vpop.permute.xlu0 %647
      %649 = vrot.lane.b32.xlu0 %v563, 8
      %v650 = vpop.permute.xlu0 %649
      %651 = vrot.lane.b32.xlu0 %v564, 8
      %v652 = vpop.permute.xlu0 %651
      %653 = vrot.lane.b32.xlu0 %v565, 8
      %v654 = vpop.permute.xlu0 %653
      %655 = vrot.lane.b32.xlu0 %v566, 8
      %v656 = vpop.permute.xlu0 %655
      %657 = vrot.lane.b32.xlu0 %v567, 8
      %v658 = vpop.permute.xlu0 %657
      %659 = vrot.lane.b32.xlu0 %v568, 8
      %v660 = vpop.permute.xlu0 %659
      %661 = vrot.lane.b32.xlu0 %v569, 8
      %v662 = vpop.permute.xlu0 %661
      %663 = vrot.lane.b32.xlu0 %v570, 8
      %v664 = vpop.permute.xlu0 %663
      %665 = vrot.lane.b32.xlu0 %v571, 8
      %v666 = vpop.permute.xlu0 %665
      %667 = vrot.lane.b32.xlu0 %v572, 8
      %v668 = vpop.permute.xlu0 %667
      %vm701 = vcmask 97344
      %702 = vst.msk [vmem:[#allocation3] sm:$0xff] %vm701, %v606
      %703 = vst.msk [vmem:[#allocation3 + $0x8] sm:$0xff] %vm701, %v608
      %704 = vst.msk [vmem:[#allocation3 + $0x10] sm:$0xff] %vm701, %v610
      %705 = vst.msk [vmem:[#allocation3 + $0x18] sm:$0xff] %vm701, %v612
      %706 = vst.msk [vmem:[#allocation3 + $0x20] sm:$0xff] %vm701, %v614
      %707 = vst.msk [vmem:[#allocation3 + $0x28] sm:$0xff] %vm701, %v616
      %708 = vst.msk [vmem:[#allocation3 + $0x30] sm:$0xff] %vm701, %v618
      %709 = vst.msk [vmem:[#allocation3 + $0x38] sm:$0xff] %vm701, %v620
      %710 = vst.msk [vmem:[#allocation3 + $0x40] sm:$0xff] %vm701, %v622
      %711 = vst.msk [vmem:[#allocation3 + $0x48] sm:$0xff] %vm701, %v624
      %712 = vst.msk [vmem:[#allocation3 + $0x50] sm:$0xff] %vm701, %v626
      %713 = vst.msk [vmem:[#allocation3 + $0x58] sm:$0xff] %vm701, %v628
      %714 = vst.msk [vmem:[#allocation3 + $0x60] sm:$0xff] %vm701, %v630
      %715 = vst.msk [vmem:[#allocation3 + $0x68] sm:$0xff] %vm701, %v632
      %716 = vst.msk [vmem:[#allocation3 + $0x70] sm:$0xff] %vm701, %v634
      %717 = vst.msk [vmem:[#allocation3 + $0x78] sm:$0xff] %vm701, %v636
      %718 = vst.msk [vmem:[#allocation3 + $0x80] sm:$0xff] %vm701, %v638
      %719 = vst.msk [vmem:[#allocation3 + $0x88] sm:$0xff] %vm701, %v640
      %720 = vst.msk [vmem:[#allocation3 + $0x90] sm:$0xff] %vm701, %v642
      %721 = vst.msk [vmem:[#allocation3 + $0x98] sm:$0xff] %vm701, %v644
      %722 = vst.msk [vmem:[#allocation3 + $0xa0] sm:$0xff] %vm701, %v646
      %723 = vst.msk [vmem:[#allocation3 + $0xa8] sm:$0xff] %vm701, %v648
      %724 = vst.msk [vmem:[#allocation3 + $0xb0] sm:$0xff] %vm701, %v650
      %725 = vst.msk [vmem:[#allocation3 + $0xb8] sm:$0xff] %vm701, %v652
      %726 = vst.msk [vmem:[#allocation3 + $0xc0] sm:$0xff] %vm701, %v654
      %727 = vst.msk [vmem:[#allocation3 + $0xc8] sm:$0xff] %vm701, %v656
      %728 = vst.msk [vmem:[#allocation3 + $0xd0] sm:$0xff] %vm701, %v658
      %729 = vst.msk [vmem:[#allocation3 + $0xd8] sm:$0xff] %vm701, %v660
      %730 = vst.msk [vmem:[#allocation3 + $0xe0] sm:$0xff] %vm701, %v662
      %731 = vst.msk [vmem:[#allocation3 + $0xe8] sm:$0xff] %vm701, %v664
      %732 = vst.msk [vmem:[#allocation3 + $0xf0] sm:$0xff] %vm701, %v666
      %733 = vst.msk [vmem:[#allocation3 + $0xf8] sm:$0xff] %vm701, %v668
      %v734 = vld [vmem:[%s153] sm:$0xff]
      %v735 = vld [vmem:[%s153 + $0x8] sm:$0xff]
      %v736 = vld [vmem:[%s153 + $0x18] sm:$0xff]
      %v737 = vld [vmem:[%s153 + $0x20] sm:$0xff]
      %v738 = vld [vmem:[%s153 + $0x30] sm:$0xff]
      %v739 = vld [vmem:[%s153 + $0x38] sm:$0xff]
      %v740 = vld [vmem:[%s153 + $0x48] sm:$0xff]
      %v741 = vld [vmem:[%s153 + $0x50] sm:$0xff]
      %v742 = vld [vmem:[%s153 + $0x60] sm:$0xff]
      %v743 = vld [vmem:[%s153 + $0x68] sm:$0xff]
      %v744 = vld [vmem:[%s153 + $0x78] sm:$0xff]
      %v745 = vld [vmem:[%s153 + $0x80] sm:$0xff]
      %v746 = vld [vmem:[%s153 + $0x90] sm:$0xff]
      %v747 = vld [vmem:[%s153 + $0x98] sm:$0xff]
      %v748 = vld [vmem:[%s153 + $0xa8] sm:$0xff]
      %v749 = vld [vmem:[%s153 + $0xb0] sm:$0xff]
      %v750 = vld [vmem:[%s153 + $0xc0] sm:$0xff]
      %v751 = vld [vmem:[%s153 + $0xc8] sm:$0xff]
      %v752 = vld [vmem:[%s153 + $0xd8] sm:$0xff]
      %v753 = vld [vmem:[%s153 + $0xe0] sm:$0xff]
      %v754 = vld [vmem:[%s153 + $0xf0] sm:$0xff]
      %v755 = vld [vmem:[%s153 + $0xf8] sm:$0xff]
      %v756 = vld [vmem:[%s153 + $0x108] sm:$0xff]
      %v757 = vld [vmem:[%s153 + $0x110] sm:$0xff]
      %v758 = vld [vmem:[%s153 + $0x120] sm:$0xff]
      %v759 = vld [vmem:[%s153 + $0x128] sm:$0xff]
      %v760 = vld [vmem:[%s153 + $0x138] sm:$0xff]
      %v761 = vld [vmem:[%s153 + $0x140] sm:$0xff]
      %v762 = vld [vmem:[%s153 + $0x150] sm:$0xff]
      %v763 = vld [vmem:[%s153 + $0x158] sm:$0xff]
      %v764 = vld [vmem:[%s153 + $0x168] sm:$0xff]
      %v765 = vld [vmem:[%s153 + $0x170] sm:$0xff]
      %798 = vrot.lane.b32.xlu0 %v734, 12
      %v799 = vpop.permute.xlu0 %798
      %800 = vrot.lane.b32.xlu0 %v735, 12
      %v801 = vpop.permute.xlu0 %800
      %802 = vrot.lane.b32.xlu0 %v736, 12
      %v803 = vpop.permute.xlu0 %802
      %804 = vrot.lane.b32.xlu0 %v737, 12
      %v805 = vpop.permute.xlu0 %804
      %806 = vrot.lane.b32.xlu0 %v738, 12
      %v807 = vpop.permute.xlu0 %806
      %808 = vrot.lane.b32.xlu0 %v739, 12
      %v809 = vpop.permute.xlu0 %808
      %810 = vrot.lane.b32.xlu0 %v740, 12
      %v811 = vpop.permute.xlu0 %810
      %812 = vrot.lane.b32.xlu0 %v741, 12
      %v813 = vpop.permute.xlu0 %812
      %814 = vrot.lane.b32.xlu0 %v742, 12
      %v815 = vpop.permute.xlu0 %814
      %816 = vrot.lane.b32.xlu0 %v743, 12
      %v817 = vpop.permute.xlu0 %816
      %818 = vrot.lane.b32.xlu0 %v744, 12
      %v819 = vpop.permute.xlu0 %818
      %820 = vrot.lane.b32.xlu0 %v745, 12
      %v821 = vpop.permute.xlu0 %820
      %822 = vrot.lane.b32.xlu0 %v746, 12
      %v823 = vpop.permute.xlu0 %822
      %824 = vrot.lane.b32.xlu0 %v747, 12
      %v825 = vpop.permute.xlu0 %824
      %826 = vrot.lane.b32.xlu0 %v748, 12
      %v827 = vpop.permute.xlu0 %826
      %828 = vrot.lane.b32.xlu0 %v749, 12
      %v829 = vpop.permute.xlu0 %828
      %830 = vrot.lane.b32.xlu0 %v750, 12
      %v831 = vpop.permute.xlu0 %830
      %832 = vrot.lane.b32.xlu0 %v751, 12
      %v833 = vpop.permute.xlu0 %832
      %834 = vrot.lane.b32.xlu0 %v752, 12
      %v835 = vpop.permute.xlu0 %834
      %836 = vrot.lane.b32.xlu0 %v753, 12
      %v837 = vpop.permute.xlu0 %836
      %838 = vrot.lane.b32.xlu0 %v754, 12
      %v839 = vpop.permute.xlu0 %838
      %840 = vrot.lane.b32.xlu0 %v755, 12
      %v841 = vpop.permute.xlu0 %840
      %842 = vrot.lane.b32.xlu0 %v756, 12
      %v843 = vpop.permute.xlu0 %842
      %844 = vrot.lane.b32.xlu0 %v757, 12
      %v845 = vpop.permute.xlu0 %844
      %846 = vrot.lane.b32.xlu0 %v758, 12
      %v847 = vpop.permute.xlu0 %846
      %848 = vrot.lane.b32.xlu0 %v759, 12
      %v849 = vpop.permute.xlu0 %848
      %850 = vrot.lane.b32.xlu0 %v760, 12
      %v851 = vpop.permute.xlu0 %850
      %852 = vrot.lane.b32.xlu0 %v761, 12
      %v853 = vpop.permute.xlu0 %852
      %854 = vrot.lane.b32.xlu0 %v762, 12
      %v855 = vpop.permute.xlu0 %854
      %856 = vrot.lane.b32.xlu0 %v763, 12
      %v857 = vpop.permute.xlu0 %856
      %858 = vrot.lane.b32.xlu0 %v764, 12
      %v859 = vpop.permute.xlu0 %858
      %860 = vrot.lane.b32.xlu0 %v765, 12
      %v861 = vpop.permute.xlu0 %860
      %vm894 = vcmask 130144
      %895 = vst.msk [vmem:[#allocation3] sm:$0xff] %vm894, %v799
      %896 = vst.msk [vmem:[#allocation3 + $0x8] sm:$0xff] %vm894, %v801
      %897 = vst.msk [vmem:[#allocation3 + $0x10] sm:$0xff] %vm894, %v803
      %898 = vst.msk [vmem:[#allocation3 + $0x18] sm:$0xff] %vm894, %v805
      %899 = vst.msk [vmem:[#allocation3 + $0x20] sm:$0xff] %vm894, %v807
      %900 = vst.msk [vmem:[#allocation3 + $0x28] sm:$0xff] %vm894, %v809
      %901 = vst.msk [vmem:[#allocation3 + $0x30] sm:$0xff] %vm894, %v811
      %902 = vst.msk [vmem:[#allocation3 + $0x38] sm:$0xff] %vm894, %v813
      %903 = vst.msk [vmem:[#allocation3 + $0x40] sm:$0xff] %vm894, %v815
      %904 = vst.msk [vmem:[#allocation3 + $0x48] sm:$0xff] %vm894, %v817
      %905 = vst.msk [vmem:[#allocation3 + $0x50] sm:$0xff] %vm894, %v819
      %906 = vst.msk [vmem:[#allocation3 + $0x58] sm:$0xff] %vm894, %v821
      %907 = vst.msk [vmem:[#allocation3 + $0x60] sm:$0xff] %vm894, %v823
      %908 = vst.msk [vmem:[#allocation3 + $0x68] sm:$0xff] %vm894, %v825
      %909 = vst.msk [vmem:[#allocation3 + $0x70] sm:$0xff] %vm894, %v827
      %910 = vst.msk [vmem:[#allocation3 + $0x78] sm:$0xff] %vm894, %v829
      %911 = vst.msk [vmem:[#allocation3 + $0x80] sm:$0xff] %vm894, %v831
      %912 = vst.msk [vmem:[#allocation3 + $0x88] sm:$0xff] %vm894, %v833
      %913 = vst.msk [vmem:[#allocation3 + $0x90] sm:$0xff] %vm894, %v835
      %914 = vst.msk [vmem:[#allocation3 + $0x98] sm:$0xff] %vm894, %v837
      %915 = vst.msk [vmem:[#allocation3 + $0xa0] sm:$0xff] %vm894, %v839
      %916 = vst.msk [vmem:[#allocation3 + $0xa8] sm:$0xff] %vm894, %v841
      %917 = vst.msk [vmem:[#allocation3 + $0xb0] sm:$0xff] %vm894, %v843
      %918 = vst.msk [vmem:[#allocation3 + $0xb8] sm:$0xff] %vm894, %v845
      %919 = vst.msk [vmem:[#allocation3 + $0xc0] sm:$0xff] %vm894, %v847
      %920 = vst.msk [vmem:[#allocation3 + $0xc8] sm:$0xff] %vm894, %v849
      %921 = vst.msk [vmem:[#allocation3 + $0xd0] sm:$0xff] %vm894, %v851
      %922 = vst.msk [vmem:[#allocation3 + $0xd8] sm:$0xff] %vm894, %v853
      %923 = vst.msk [vmem:[#allocation3 + $0xe0] sm:$0xff] %vm894, %v855
      %924 = vst.msk [vmem:[#allocation3 + $0xe8] sm:$0xff] %vm894, %v857
      %925 = vst.msk [vmem:[#allocation3 + $0xf0] sm:$0xff] %vm894, %v859
      %926 = vst.msk [vmem:[#allocation3 + $0xf8] sm:$0xff] %vm894, %v861
      %v927 = vld [vmem:[%s153 + $0x1] sm:$0xff]
      %v928 = vld [vmem:[%s153 + $0x9] sm:$0xff]
      %v929 = vld [vmem:[%s153 + $0x19] sm:$0xff]
      %v930 = vld [vmem:[%s153 + $0x21] sm:$0xff]
      %v931 = vld [vmem:[%s153 + $0x31] sm:$0xff]
      %v932 = vld [vmem:[%s153 + $0x39] sm:$0xff]
      %v933 = vld [vmem:[%s153 + $0x49] sm:$0xff]
      %v934 = vld [vmem:[%s153 + $0x51] sm:$0xff]
      %v935 = vld [vmem:[%s153 + $0x61] sm:$0xff]
      %v936 = vld [vmem:[%s153 + $0x69] sm:$0xff]
      %v937 = vld [vmem:[%s153 + $0x79] sm:$0xff]
      %v938 = vld [vmem:[%s153 + $0x81] sm:$0xff]
      %v939 = vld [vmem:[%s153 + $0x91] sm:$0xff]
      %v940 = vld [vmem:[%s153 + $0x99] sm:$0xff]
      %v941 = vld [vmem:[%s153 + $0xa9] sm:$0xff]
      %v942 = vld [vmem:[%s153 + $0xb1] sm:$0xff]
      %v943 = vld [vmem:[%s153 + $0xc1] sm:$0xff]
      %v944 = vld [vmem:[%s153 + $0xc9] sm:$0xff]
      %v945 = vld [vmem:[%s153 + $0xd9] sm:$0xff]
      %v946 = vld [vmem:[%s153 + $0xe1] sm:$0xff]
      %v947 = vld [vmem:[%s153 + $0xf1] sm:$0xff]
      %v948 = vld [vmem:[%s153 + $0xf9] sm:$0xff]
      %v949 = vld [vmem:[%s153 + $0x109] sm:$0xff]
      %v950 = vld [vmem:[%s153 + $0x111] sm:$0xff]
      %v951 = vld [vmem:[%s153 + $0x121] sm:$0xff]
      %v952 = vld [vmem:[%s153 + $0x129] sm:$0xff]
      %v953 = vld [vmem:[%s153 + $0x139] sm:$0xff]
      %v954 = vld [vmem:[%s153 + $0x141] sm:$0xff]
      %v955 = vld [vmem:[%s153 + $0x151] sm:$0xff]
      %v956 = vld [vmem:[%s153 + $0x159] sm:$0xff]
      %v957 = vld [vmem:[%s153 + $0x169] sm:$0xff]
      %v958 = vld [vmem:[%s153 + $0x171] sm:$0xff]
      %991 = vrot.lane.b32.xlu0 %v927, 16
      %v992 = vpop.permute.xlu0 %991
      %993 = vrot.lane.b32.xlu0 %v928, 16
      %v994 = vpop.permute.xlu0 %993
      %995 = vrot.lane.b32.xlu0 %v929, 16
      %v996 = vpop.permute.xlu0 %995
      %997 = vrot.lane.b32.xlu0 %v930, 16
      %v998 = vpop.permute.xlu0 %997
      %999 = vrot.lane.b32.xlu0 %v931, 16
      %v1000 = vpop.permute.xlu0 %999
      %1001 = vrot.lane.b32.xlu0 %v932, 16
      %v1002 = vpop.permute.xlu0 %1001
      %1003 = vrot.lane.b32.xlu0 %v933, 16
      %v1004 = vpop.permute.xlu0 %1003
      %1005 = vrot.lane.b32.xlu0 %v934, 16
      %v1006 = vpop.permute.xlu0 %1005
      %1007 = vrot.lane.b32.xlu0 %v935, 16
      %v1008 = vpop.permute.xlu0 %1007
      %1009 = vrot.lane.b32.xlu0 %v936, 16
      %v1010 = vpop.permute.xlu0 %1009
      %1011 = vrot.lane.b32.xlu0 %v937, 16
      %v1012 = vpop.permute.xlu0 %1011
      %1013 = vrot.lane.b32.xlu0 %v938, 16
      %v1014 = vpop.permute.xlu0 %1013
      %1015 = vrot.lane.b32.xlu0 %v939, 16
      %v1016 = vpop.permute.xlu0 %1015
      %1017 = vrot.lane.b32.xlu0 %v940, 16
      %v1018 = vpop.permute.xlu0 %1017
      %1019 = vrot.lane.b32.xlu0 %v941, 16
      %v1020 = vpop.permute.xlu0 %1019
      %1021 = vrot.lane.b32.xlu0 %v942, 16
      %v1022 = vpop.permute.xlu0 %1021
      %1023 = vrot.lane.b32.xlu0 %v943, 16
      %v1024 = vpop.permute.xlu0 %1023
      %1025 = vrot.lane.b32.xlu0 %v944, 16
      %v1026 = vpop.permute.xlu0 %1025
      %1027 = vrot.lane.b32.xlu0 %v945, 16
      %v1028 = vpop.permute.xlu0 %1027
      %1029 = vrot.lane.b32.xlu0 %v946, 16
      %v1030 = vpop.permute.xlu0 %1029
      %1031 = vrot.lane.b32.xlu0 %v947, 16
      %v1032 = vpop.permute.xlu0 %1031
      %1033 = vrot.lane.b32.xlu0 %v948, 16
      %v1034 = vpop.permute.xlu0 %1033
      %1035 = vrot.lane.b32.xlu0 %v949, 16
      %v1036 = vpop.permute.xlu0 %1035
      %1037 = vrot.lane.b32.xlu0 %v950, 16
      %v1038 = vpop.permute.xlu0 %1037
      %1039 = vrot.lane.b32.xlu0 %v951, 16
      %v1040 = vpop.permute.xlu0 %1039
      %1041 = vrot.lane.b32.xlu0 %v952, 16
      %v1042 = vpop.permute.xlu0 %1041
      %1043 = vrot.lane.b32.xlu0 %v953, 16
      %v1044 = vpop.permute.xlu0 %1043
      %1045 = vrot.lane.b32.xlu0 %v954, 16
      %v1046 = vpop.permute.xlu0 %1045
      %1047 = vrot.lane.b32.xlu0 %v955, 16
      %v1048 = vpop.permute.xlu0 %1047
      %1049 = vrot.lane.b32.xlu0 %v956, 16
      %v1050 = vpop.permute.xlu0 %1049
      %1051 = vrot.lane.b32.xlu0 %v957, 16
      %v1052 = vpop.permute.xlu0 %1051
      %1053 = vrot.lane.b32.xlu0 %v958, 16
      %v1054 = vpop.permute.xlu0 %1053
      %vm1087 = vcmask 162944
      %1088 = vst.msk [vmem:[#allocation3] sm:$0xff] %vm1087, %v992
      %1089 = vst.msk [vmem:[#allocation3 + $0x8] sm:$0xff] %vm1087, %v994
      %1090 = vst.msk [vmem:[#allocation3 + $0x10] sm:$0xff] %vm1087, %v996
      %1091 = vst.msk [vmem:[#allocation3 + $0x18] sm:$0xff] %vm1087, %v998
      %1092 = vst.msk [vmem:[#allocation3 + $0x20] sm:$0xff] %vm1087, %v1000
      %1093 = vst.msk [vmem:[#allocation3 + $0x28] sm:$0xff] %vm1087, %v1002
      %1094 = vst.msk [vmem:[#allocation3 + $0x30] sm:$0xff] %vm1087, %v1004
      %1095 = vst.msk [vmem:[#allocation3 + $0x38] sm:$0xff] %vm1087, %v1006
      %1096 = vst.msk [vmem:[#allocation3 + $0x40] sm:$0xff] %vm1087, %v1008
      %1097 = vst.msk [vmem:[#allocation3 + $0x48] sm:$0xff] %vm1087, %v1010
      %1098 = vst.msk [vmem:[#allocation3 + $0x50] sm:$0xff] %vm1087, %v1012
      %1099 = vst.msk [vmem:[#allocation3 + $0x58] sm:$0xff] %vm1087, %v1014
      %1100 = vst.msk [vmem:[#allocation3 + $0x60] sm:$0xff] %vm1087, %v1016
      %1101 = vst.msk [vmem:[#allocation3 + $0x68] sm:$0xff] %vm1087, %v1018
      %1102 = vst.msk [vmem:[#allocation3 + $0x70] sm:$0xff] %vm1087, %v1020
      %1103 = vst.msk [vmem:[#allocation3 + $0x78] sm:$0xff] %vm1087, %v1022
      %1104 = vst.msk [vmem:[#allocation3 + $0x80] sm:$0xff] %vm1087, %v1024
      %1105 = vst.msk [vmem:[#allocation3 + $0x88] sm:$0xff] %vm1087, %v1026
      %1106 = vst.msk [vmem:[#allocation3 + $0x90] sm:$0xff] %vm1087, %v1028
      %1107 = vst.msk [vmem:[#allocation3 + $0x98] sm:$0xff] %vm1087, %v1030
      %1108 = vst.msk [vmem:[#allocation3 + $0xa0] sm:$0xff] %vm1087, %v1032
      %1109 = vst.msk [vmem:[#allocation3 + $0xa8] sm:$0xff] %vm1087, %v1034
      %1110 = vst.msk [vmem:[#allocation3 + $0xb0] sm:$0xff] %vm1087, %v1036
      %1111 = vst.msk [vmem:[#allocation3 + $0xb8] sm:$0xff] %vm1087, %v1038
      %1112 = vst.msk [vmem:[#allocation3 + $0xc0] sm:$0xff] %vm1087, %v1040
      %1113 = vst.msk [vmem:[#allocation3 + $0xc8] sm:$0xff] %vm1087, %v1042
      %1114 = vst.msk [vmem:[#allocation3 + $0xd0] sm:$0xff] %vm1087, %v1044
      %1115 = vst.msk [vmem:[#allocation3 + $0xd8] sm:$0xff] %vm1087, %v1046
      %1116 = vst.msk [vmem:[#allocation3 + $0xe0] sm:$0xff] %vm1087, %v1048
      %1117 = vst.msk [vmem:[#allocation3 + $0xe8] sm:$0xff] %vm1087, %v1050
      %1118 = vst.msk [vmem:[#allocation3 + $0xf0] sm:$0xff] %vm1087, %v1052
      %1119 = vst.msk [vmem:[#allocation3 + $0xf8] sm:$0xff] %vm1087, %v1054
      %v1120 = vld [vmem:[%s153 + $0x2] sm:$0xff]
      %v1121 = vld [vmem:[%s153 + $0xa] sm:$0xff]
      %v1122 = vld [vmem:[%s153 + $0x1a] sm:$0xff]
      %v1123 = vld [vmem:[%s153 + $0x22] sm:$0xff]
      %v1124 = vld [vmem:[%s153 + $0x32] sm:$0xff]
      %v1125 = vld [vmem:[%s153 + $0x3a] sm:$0xff]
      %v1126 = vld [vmem:[%s153 + $0x4a] sm:$0xff]
      %v1127 = vld [vmem:[%s153 + $0x52] sm:$0xff]
      %v1128 = vld [vmem:[%s153 + $0x62] sm:$0xff]
      %v1129 = vld [vmem:[%s153 + $0x6a] sm:$0xff]
      %v1130 = vld [vmem:[%s153 + $0x7a] sm:$0xff]
      %v1131 = vld [vmem:[%s153 + $0x82] sm:$0xff]
      %v1132 = vld [vmem:[%s153 + $0x92] sm:$0xff]
      %v1133 = vld [vmem:[%s153 + $0x9a] sm:$0xff]
      %v1134 = vld [vmem:[%s153 + $0xaa] sm:$0xff]
      %v1135 = vld [vmem:[%s153 + $0xb2] sm:$0xff]
      %v1136 = vld [vmem:[%s153 + $0xc2] sm:$0xff]
      %v1137 = vld [vmem:[%s153 + $0xca] sm:$0xff]
      %v1138 = vld [vmem:[%s153 + $0xda] sm:$0xff]
      %v1139 = vld [vmem:[%s153 + $0xe2] sm:$0xff]
      %v1140 = vld [vmem:[%s153 + $0xf2] sm:$0xff]
      %v1141 = vld [vmem:[%s153 + $0xfa] sm:$0xff]
      %v1142 = vld [vmem:[%s153 + $0x10a] sm:$0xff]
      %v1143 = vld [vmem:[%s153 + $0x112] sm:$0xff]
      %v1144 = vld [vmem:[%s153 + $0x122] sm:$0xff]
      %v1145 = vld [vmem:[%s153 + $0x12a] sm:$0xff]
      %v1146 = vld [vmem:[%s153 + $0x13a] sm:$0xff]
      %v1147 = vld [vmem:[%s153 + $0x142] sm:$0xff]
      %v1148 = vld [vmem:[%s153 + $0x152] sm:$0xff]
      %v1149 = vld [vmem:[%s153 + $0x15a] sm:$0xff]
      %v1150 = vld [vmem:[%s153 + $0x16a] sm:$0xff]
      %v1151 = vld [vmem:[%s153 + $0x172] sm:$0xff]
      %1184 = vrot.lane.b32.xlu0 %v1120, 20
      %v1185 = vpop.permute.xlu0 %1184
      %1186 = vrot.lane.b32.xlu0 %v1121, 20
      %v1187 = vpop.permute.xlu0 %1186
      %1188 = vrot.lane.b32.xlu0 %v1122, 20
      %v1189 = vpop.permute.xlu0 %1188
      %1190 = vrot.lane.b32.xlu0 %v1123, 20
      %v1191 = vpop.permute.xlu0 %1190
      %1192 = vrot.lane.b32.xlu0 %v1124, 20
      %v1193 = vpop.permute.xlu0 %1192
      %1194 = vrot.lane.b32.xlu0 %v1125, 20
      %v1195 = vpop.permute.xlu0 %1194
      %1196 = vrot.lane.b32.xlu0 %v1126, 20
      %v1197 = vpop.permute.xlu0 %1196
      %1198 = vrot.lane.b32.xlu0 %v1127, 20
      %v1199 = vpop.permute.xlu0 %1198
      %1200 = vrot.lane.b32.xlu0 %v1128, 20
      %v1201 = vpop.permute.xlu0 %1200
      %1202 = vrot.lane.b32.xlu0 %v1129, 20
      %v1203 = vpop.permute.xlu0 %1202
      %1204 = vrot.lane.b32.xlu0 %v1130, 20
      %v1205 = vpop.permute.xlu0 %1204
      %1206 = vrot.lane.b32.xlu0 %v1131, 20
      %v1207 = vpop.permute.xlu0 %1206
      %1208 = vrot.lane.b32.xlu0 %v1132, 20
      %v1209 = vpop.permute.xlu0 %1208
      %1210 = vrot.lane.b32.xlu0 %v1133, 20
      %v1211 = vpop.permute.xlu0 %1210
      %1212 = vrot.lane.b32.xlu0 %v1134, 20
      %v1213 = vpop.permute.xlu0 %1212
      %1214 = vrot.lane.b32.xlu0 %v1135, 20
      %v1215 = vpop.permute.xlu0 %1214
      %1216 = vrot.lane.b32.xlu0 %v1136, 20
      %v1217 = vpop.permute.xlu0 %1216
      %1218 = vrot.lane.b32.xlu0 %v1137, 20
      %v1219 = vpop.permute.xlu0 %1218
      %1220 = vrot.lane.b32.xlu0 %v1138, 20
      %v1221 = vpop.permute.xlu0 %1220
      %1222 = vrot.lane.b32.xlu0 %v1139, 20
      %v1223 = vpop.permute.xlu0 %1222
      %1224 = vrot.lane.b32.xlu0 %v1140, 20
      %v1225 = vpop.permute.xlu0 %1224
      %1226 = vrot.lane.b32.xlu0 %v1141, 20
      %v1227 = vpop.permute.xlu0 %1226
      %1228 = vrot.lane.b32.xlu0 %v1142, 20
      %v1229 = vpop.permute.xlu0 %1228
      %1230 = vrot.lane.b32.xlu0 %v1143, 20
      %v1231 = vpop.permute.xlu0 %1230
      %1232 = vrot.lane.b32.xlu0 %v1144, 20
      %v1233 = vpop.permute.xlu0 %1232
      %1234 = vrot.lane.b32.xlu0 %v1145, 20
      %v1235 = vpop.permute.xlu0 %1234
      %1236 = vrot.lane.b32.xlu0 %v1146, 20
      %v1237 = vpop.permute.xlu0 %1236
      %1238 = vrot.lane.b32.xlu0 %v1147, 20
      %v1239 = vpop.permute.xlu0 %1238
      %1240 = vrot.lane.b32.xlu0 %v1148, 20
      %v1241 = vpop.permute.xlu0 %1240
      %1242 = vrot.lane.b32.xlu0 %v1149, 20
      %v1243 = vpop.permute.xlu0 %1242
      %1244 = vrot.lane.b32.xlu0 %v1150, 20
      %v1245 = vpop.permute.xlu0 %1244
      %1246 = vrot.lane.b32.xlu0 %v1151, 20
      %v1247 = vpop.permute.xlu0 %1246
      %vm1280 = vcmask 195744
      %1281 = vst.msk [vmem:[#allocation3] sm:$0xff] %vm1280, %v1185
      %1282 = vst.msk [vmem:[#allocation3 + $0x8] sm:$0xff] %vm1280, %v1187
      %1283 = vst.msk [vmem:[#allocation3 + $0x10] sm:$0xff] %vm1280, %v1189
      %1284 = vst.msk [vmem:[#allocation3 + $0x18] sm:$0xff] %vm1280, %v1191
      %1285 = vst.msk [vmem:[#allocation3 + $0x20] sm:$0xff] %vm1280, %v1193
      %1286 = vst.msk [vmem:[#allocation3 + $0x28] sm:$0xff] %vm1280, %v1195
      %1287 = vst.msk [vmem:[#allocation3 + $0x30] sm:$0xff] %vm1280, %v1197
      %1288 = vst.msk [vmem:[#allocation3 + $0x38] sm:$0xff] %vm1280, %v1199
      %1289 = vst.msk [vmem:[#allocation3 + $0x40] sm:$0xff] %vm1280, %v1201
      %1290 = vst.msk [vmem:[#allocation3 + $0x48] sm:$0xff] %vm1280, %v1203
      %1291 = vst.msk [vmem:[#allocation3 + $0x50] sm:$0xff] %vm1280, %v1205
      %1292 = vst.msk [vmem:[#allocation3 + $0x58] sm:$0xff] %vm1280, %v1207
      %1293 = vst.msk [vmem:[#allocation3 + $0x60] sm:$0xff] %vm1280, %v1209
      %1294 = vst.msk [vmem:[#allocation3 + $0x68] sm:$0xff] %vm1280, %v1211
      %1295 = vst.msk [vmem:[#allocation3 + $0x70] sm:$0xff] %vm1280, %v1213
      %1296 = vst.msk [vmem:[#allocation3 + $0x78] sm:$0xff] %vm1280, %v1215
      %1297 = vst.msk [vmem:[#allocation3 + $0x80] sm:$0xff] %vm1280, %v1217
      %1298 = vst.msk [vmem:[#allocation3 + $0x88] sm:$0xff] %vm1280, %v1219
      %1299 = vst.msk [vmem:[#allocation3 + $0x90] sm:$0xff] %vm1280, %v1221
      %1300 = vst.msk [vmem:[#allocation3 + $0x98] sm:$0xff] %vm1280, %v1223
      %1301 = vst.msk [vmem:[#allocation3 + $0xa0] sm:$0xff] %vm1280, %v1225
      %1302 = vst.msk [vmem:[#allocation3 + $0xa8] sm:$0xff] %vm1280, %v1227
      %1303 = vst.msk [vmem:[#allocation3 + $0xb0] sm:$0xff] %vm1280, %v1229
      %1304 = vst.msk [vmem:[#allocation3 + $0xb8] sm:$0xff] %vm1280, %v1231
      %1305 = vst.msk [vmem:[#allocation3 + $0xc0] sm:$0xff] %vm1280, %v1233
      %1306 = vst.msk [vmem:[#allocation3 + $0xc8] sm:$0xff] %vm1280, %v1235
      %1307 = vst.msk [vmem:[#allocation3 + $0xd0] sm:$0xff] %vm1280, %v1237
      %1308 = vst.msk [vmem:[#allocation3 + $0xd8] sm:$0xff] %vm1280, %v1239
      %1309 = vst.msk [vmem:[#allocation3 + $0xe0] sm:$0xff] %vm1280, %v1241
      %1310 = vst.msk [vmem:[#allocation3 + $0xe8] sm:$0xff] %vm1280, %v1243
      %1311 = vst.msk [vmem:[#allocation3 + $0xf0] sm:$0xff] %vm1280, %v1245
      %1312 = vst.msk [vmem:[#allocation3 + $0xf8] sm:$0xff] %vm1280, %v1247
      %s1313 = scalar_lea.vmem [#allocation2], 48
      %v1314 = vld [vmem:[%s1313] sm:$0xff]
      %v1315 = vld [vmem:[%s1313 + $0x8] sm:$0xff]
      %v1316 = vld [vmem:[%s1313 + $0x18] sm:$0xff]
      %v1317 = vld [vmem:[%s1313 + $0x20] sm:$0xff]
      %v1318 = vld [vmem:[%s1313 + $0x30] sm:$0xff]
      %v1319 = vld [vmem:[%s1313 + $0x38] sm:$0xff]
      %v1320 = vld [vmem:[%s1313 + $0x48] sm:$0xff]
      %v1321 = vld [vmem:[%s1313 + $0x50] sm:$0xff]
      %v1322 = vld [vmem:[%s1313 + $0x60] sm:$0xff]
      %v1323 = vld [vmem:[%s1313 + $0x68] sm:$0xff]
      %v1324 = vld [vmem:[%s1313 + $0x78] sm:$0xff]
      %v1325 = vld [vmem:[%s1313 + $0x80] sm:$0xff]
      %v1326 = vld [vmem:[%s1313 + $0x90] sm:$0xff]
      %v1327 = vld [vmem:[%s1313 + $0x98] sm:$0xff]
      %v1328 = vld [vmem:[%s1313 + $0xa8] sm:$0xff]
      %v1329 = vld [vmem:[%s1313 + $0xb0] sm:$0xff]
      %v1330 = vld [vmem:[%s1313 + $0xc0] sm:$0xff]
      %v1331 = vld [vmem:[%s1313 + $0xc8] sm:$0xff]
      %v1332 = vld [vmem:[%s1313 + $0xd8] sm:$0xff]
      %v1333 = vld [vmem:[%s1313 + $0xe0] sm:$0xff]
      %v1334 = vld [vmem:[%s1313 + $0xf0] sm:$0xff]
      %v1335 = vld [vmem:[%s1313 + $0xf8] sm:$0xff]
      %v1336 = vld [vmem:[%s1313 + $0x108] sm:$0xff]
      %v1337 = vld [vmem:[%s1313 + $0x110] sm:$0xff]
      %v1338 = vld [vmem:[%s1313 + $0x120] sm:$0xff]
      %v1339 = vld [vmem:[%s1313 + $0x128] sm:$0xff]
      %v1340 = vld [vmem:[%s1313 + $0x138] sm:$0xff]
      %v1341 = vld [vmem:[%s1313 + $0x140] sm:$0xff]
      %v1342 = vld [vmem:[%s1313 + $0x150] sm:$0xff]
      %v1343 = vld [vmem:[%s1313 + $0x158] sm:$0xff]
      %v1344 = vld [vmem:[%s1313 + $0x168] sm:$0xff]
      %v1345 = vld [vmem:[%s1313 + $0x170] sm:$0xff]
      %1378 = vrot.lane.b32.xlu0 %v1314, 24
      %v1379 = vpop.permute.xlu0 %1378
      %1380 = vrot.lane.b32.xlu0 %v1315, 24
      %v1381 = vpop.permute.xlu0 %1380
      %1382 = vrot.lane.b32.xlu0 %v1316, 24
      %v1383 = vpop.permute.xlu0 %1382
      %1384 = vrot.lane.b32.xlu0 %v1317, 24
      %v1385 = vpop.permute.xlu0 %1384
      %1386 = vrot.lane.b32.xlu0 %v1318, 24
      %v1387 = vpop.permute.xlu0 %1386
      %1388 = vrot.lane.b32.xlu0 %v1319, 24
      %v1389 = vpop.permute.xlu0 %1388
      %1390 = vrot.lane.b32.xlu0 %v1320, 24
      %v1391 = vpop.permute.xlu0 %1390
      %1392 = vrot.lane.b32.xlu0 %v1321, 24
      %v1393 = vpop.permute.xlu0 %1392
      %1394 = vrot.lane.b32.xlu0 %v1322, 24
      %v1395 = vpop.permute.xlu0 %1394
      %1396 = vrot.lane.b32.xlu0 %v1323, 24
      %v1397 = vpop.permute.xlu0 %1396
      %1398 = vrot.lane.b32.xlu0 %v1324, 24
      %v1399 = vpop.permute.xlu0 %1398
      %1400 = vrot.lane.b32.xlu0 %v1325, 24
      %v1401 = vpop.permute.xlu0 %1400
      %1402 = vrot.lane.b32.xlu0 %v1326, 24
      %v1403 = vpop.permute.xlu0 %1402
      %1404 = vrot.lane.b32.xlu0 %v1327, 24
      %v1405 = vpop.permute.xlu0 %1404
      %1406 = vrot.lane.b32.xlu0 %v1328, 24
      %v1407 = vpop.permute.xlu0 %1406
      %1408 = vrot.lane.b32.xlu0 %v1329, 24
      %v1409 = vpop.permute.xlu0 %1408
      %1410 = vrot.lane.b32.xlu0 %v1330, 24
      %v1411 = vpop.permute.xlu0 %1410
      %1412 = vrot.lane.b32.xlu0 %v1331, 24
      %v1413 = vpop.permute.xlu0 %1412
      %1414 = vrot.lane.b32.xlu0 %v1332, 24
      %v1415 = vpop.permute.xlu0 %1414
      %1416 = vrot.lane.b32.xlu0 %v1333, 24
      %v1417 = vpop.permute.xlu0 %1416
      %1418 = vrot.lane.b32.xlu0 %v1334, 24
      %v1419 = vpop.permute.xlu0 %1418
      %1420 = vrot.lane.b32.xlu0 %v1335, 24
      %v1421 = vpop.permute.xlu0 %1420
      %1422 = vrot.lane.b32.xlu0 %v1336, 24
      %v1423 = vpop.permute.xlu0 %1422
      %1424 = vrot.lane.b32.xlu0 %v1337, 24
      %v1425 = vpop.permute.xlu0 %1424
      %1426 = vrot.lane.b32.xlu0 %v1338, 24
      %v1427 = vpop.permute.xlu0 %1426
      %1428 = vrot.lane.b32.xlu0 %v1339, 24
      %v1429 = vpop.permute.xlu0 %1428
      %1430 = vrot.lane.b32.xlu0 %v1340, 24
      %v1431 = vpop.permute.xlu0 %1430
      %1432 = vrot.lane.b32.xlu0 %v1341, 24
      %v1433 = vpop.permute.xlu0 %1432
      %1434 = vrot.lane.b32.xlu0 %v1342, 24
      %v1435 = vpop.permute.xlu0 %1434
      %1436 = vrot.lane.b32.xlu0 %v1343, 24
      %v1437 = vpop.permute.xlu0 %1436
      %1438 = vrot.lane.b32.xlu0 %v1344, 24
      %v1439 = vpop.permute.xlu0 %1438
      %1440 = vrot.lane.b32.xlu0 %v1345, 24
      %v1441 = vpop.permute.xlu0 %1440
      %vm1474 = vcmask 228544
      %1475 = vst.msk [vmem:[#allocation3] sm:$0xff] %vm1474, %v1379
      %1476 = vst.msk [vmem:[#allocation3 + $0x8] sm:$0xff] %vm1474, %v1381
      %1477 = vst.msk [vmem:[#allocation3 + $0x10] sm:$0xff] %vm1474, %v1383
      %1478 = vst.msk [vmem:[#allocation3 + $0x18] sm:$0xff] %vm1474, %v1385
      %1479 = vst.msk [vmem:[#allocation3 + $0x20] sm:$0xff] %vm1474, %v1387
      %1480 = vst.msk [vmem:[#allocation3 + $0x28] sm:$0xff] %vm1474, %v1389
      %1481 = vst.msk [vmem:[#allocation3 + $0x30] sm:$0xff] %vm1474, %v1391
      %1482 = vst.msk [vmem:[#allocation3 + $0x38] sm:$0xff] %vm1474, %v1393
      %1483 = vst.msk [vmem:[#allocation3 + $0x40] sm:$0xff] %vm1474, %v1395
      %1484 = vst.msk [vmem:[#allocation3 + $0x48] sm:$0xff] %vm1474, %v1397
      %1485 = vst.msk [vmem:[#allocation3 + $0x50] sm:$0xff] %vm1474, %v1399
      %1486 = vst.msk [vmem:[#allocation3 + $0x58] sm:$0xff] %vm1474, %v1401
      %1487 = vst.msk [vmem:[#allocation3 + $0x60] sm:$0xff] %vm1474, %v1403
      %1488 = vst.msk [vmem:[#allocation3 + $0x68] sm:$0xff] %vm1474, %v1405
      %1489 = vst.msk [vmem:[#allocation3 + $0x70] sm:$0xff] %vm1474, %v1407
      %1490 = vst.msk [vmem:[#allocation3 + $0x78] sm:$0xff] %vm1474, %v1409
      %1491 = vst.msk [vmem:[#allocation3 + $0x80] sm:$0xff] %vm1474, %v1411
      %1492 = vst.msk [vmem:[#allocation3 + $0x88] sm:$0xff] %vm1474, %v1413
      %1493 = vst.msk [vmem:[#allocation3 + $0x90] sm:$0xff] %vm1474, %v1415
      %1494 = vst.msk [vmem:[#allocation3 + $0x98] sm:$0xff] %vm1474, %v1417
      %1495 = vst.msk [vmem:[#allocation3 + $0xa0] sm:$0xff] %vm1474, %v1419
      %1496 = vst.msk [vmem:[#allocation3 + $0xa8] sm:$0xff] %vm1474, %v1421
      %1497 = vst.msk [vmem:[#allocation3 + $0xb0] sm:$0xff] %vm1474, %v1423
      %1498 = vst.msk [vmem:[#allocation3 + $0xb8] sm:$0xff] %vm1474, %v1425
      %1499 = vst.msk [vmem:[#allocation3 + $0xc0] sm:$0xff] %vm1474, %v1427
      %1500 = vst.msk [vmem:[#allocation3 + $0xc8] sm:$0xff] %vm1474, %v1429
      %1501 = vst.msk [vmem:[#allocation3 + $0xd0] sm:$0xff] %vm1474, %v1431
      %1502 = vst.msk [vmem:[#allocation3 + $0xd8] sm:$0xff] %vm1474, %v1433
      %1503 = vst.msk [vmem:[#allocation3 + $0xe0] sm:$0xff] %vm1474, %v1435
      %1504 = vst.msk [vmem:[#allocation3 + $0xe8] sm:$0xff] %vm1474, %v1437
      %1505 = vst.msk [vmem:[#allocation3 + $0xf0] sm:$0xff] %vm1474, %v1439
      %1506 = vst.msk [vmem:[#allocation3 + $0xf8] sm:$0xff] %vm1474, %v1441
      %v1507 = vld [vmem:[%s1313 + $0x1] sm:$0xff]
      %v1508 = vld [vmem:[%s1313 + $0x9] sm:$0xff]
      %v1509 = vld [vmem:[%s1313 + $0x19] sm:$0xff]
      %v1510 = vld [vmem:[%s1313 + $0x21] sm:$0xff]
      %v1511 = vld [vmem:[%s1313 + $0x31] sm:$0xff]
      %v1512 = vld [vmem:[%s1313 + $0x39] sm:$0xff]
      %v1513 = vld [vmem:[%s1313 + $0x49] sm:$0xff]
      %v1514 = vld [vmem:[%s1313 + $0x51] sm:$0xff]
      %v1515 = vld [vmem:[%s1313 + $0x61] sm:$0xff]
      %v1516 = vld [vmem:[%s1313 + $0x69] sm:$0xff]
      %v1517 = vld [vmem:[%s1313 + $0x79] sm:$0xff]
      %v1518 = vld [vmem:[%s1313 + $0x81] sm:$0xff]
      %v1519 = vld [vmem:[%s1313 + $0x91] sm:$0xff]
      %v1520 = vld [vmem:[%s1313 + $0x99] sm:$0xff]
      %v1521 = vld [vmem:[%s1313 + $0xa9] sm:$0xff]
      %v1522 = vld [vmem:[%s1313 + $0xb1] sm:$0xff]
      %v1523 = vld [vmem:[%s1313 + $0xc1] sm:$0xff]
      %v1524 = vld [vmem:[%s1313 + $0xc9] sm:$0xff]
      %v1525 = vld [vmem:[%s1313 + $0xd9] sm:$0xff]
      %v1526 = vld [vmem:[%s1313 + $0xe1] sm:$0xff]
      %v1527 = vld [vmem:[%s1313 + $0xf1] sm:$0xff]
      %v1528 = vld [vmem:[%s1313 + $0xf9] sm:$0xff]
      %v1529 = vld [vmem:[%s1313 + $0x109] sm:$0xff]
      %v1530 = vld [vmem:[%s1313 + $0x111] sm:$0xff]
      %v1531 = vld [vmem:[%s1313 + $0x121] sm:$0xff]
      %v1532 = vld [vmem:[%s1313 + $0x129] sm:$0xff]
      %v1533 = vld [vmem:[%s1313 + $0x139] sm:$0xff]
      %v1534 = vld [vmem:[%s1313 + $0x141] sm:$0xff]
      %v1535 = vld [vmem:[%s1313 + $0x151] sm:$0xff]
      %v1536 = vld [vmem:[%s1313 + $0x159] sm:$0xff]
      %v1537 = vld [vmem:[%s1313 + $0x169] sm:$0xff]
      %v1538 = vld [vmem:[%s1313 + $0x171] sm:$0xff]
      %1571 = vrot.lane.b32.xlu0 %v1507, 28
      %v1572 = vpop.permute.xlu0 %1571
      %1573 = vrot.lane.b32.xlu0 %v1508, 28
      %v1574 = vpop.permute.xlu0 %1573
      %1575 = vrot.lane.b32.xlu0 %v1509, 28
      %v1576 = vpop.permute.xlu0 %1575
      %1577 = vrot.lane.b32.xlu0 %v1510, 28
      %v1578 = vpop.permute.xlu0 %1577
      %1579 = vrot.lane.b32.xlu0 %v1511, 28
      %v1580 = vpop.permute.xlu0 %1579
      %1581 = vrot.lane.b32.xlu0 %v1512, 28
      %v1582 = vpop.permute.xlu0 %1581
      %1583 = vrot.lane.b32.xlu0 %v1513, 28
      %v1584 = vpop.permute.xlu0 %1583
      %1585 = vrot.lane.b32.xlu0 %v1514, 28
      %v1586 = vpop.permute.xlu0 %1585
      %1587 = vrot.lane.b32.xlu0 %v1515, 28
      %v1588 = vpop.permute.xlu0 %1587
      %1589 = vrot.lane.b32.xlu0 %v1516, 28
      %v1590 = vpop.permute.xlu0 %1589
      %1591 = vrot.lane.b32.xlu0 %v1517, 28
      %v1592 = vpop.permute.xlu0 %1591
      %1593 = vrot.lane.b32.xlu0 %v1518, 28
      %v1594 = vpop.permute.xlu0 %1593
      %1595 = vrot.lane.b32.xlu0 %v1519, 28
      %v1596 = vpop.permute.xlu0 %1595
      %1597 = vrot.lane.b32.xlu0 %v1520, 28
      %v1598 = vpop.permute.xlu0 %1597
      %1599 = vrot.lane.b32.xlu0 %v1521, 28
      %v1600 = vpop.permute.xlu0 %1599
      %1601 = vrot.lane.b32.xlu0 %v1522, 28
      %v1602 = vpop.permute.xlu0 %1601
      %1603 = vrot.lane.b32.xlu0 %v1523, 28
      %v1604 = vpop.permute.xlu0 %1603
      %1605 = vrot.lane.b32.xlu0 %v1524, 28
      %v1606 = vpop.permute.xlu0 %1605
      %1607 = vrot.lane.b32.xlu0 %v1525, 28
      %v1608 = vpop.permute.xlu0 %1607
      %1609 = vrot.lane.b32.xlu0 %v1526, 28
      %v1610 = vpop.permute.xlu0 %1609
      %1611 = vrot.lane.b32.xlu0 %v1527, 28
      %v1612 = vpop.permute.xlu0 %1611
      %1613 = vrot.lane.b32.xlu0 %v1528, 28
      %v1614 = vpop.permute.xlu0 %1613
      %1615 = vrot.lane.b32.xlu0 %v1529, 28
      %v1616 = vpop.permute.xlu0 %1615
      %1617 = vrot.lane.b32.xlu0 %v1530, 28
      %v1618 = vpop.permute.xlu0 %1617
      %1619 = vrot.lane.b32.xlu0 %v1531, 28
      %v1620 = vpop.permute.xlu0 %1619
      %1621 = vrot.lane.b32.xlu0 %v1532, 28
      %v1622 = vpop.permute.xlu0 %1621
      %1623 = vrot.lane.b32.xlu0 %v1533, 28
      %v1624 = vpop.permute.xlu0 %1623
      %1625 = vrot.lane.b32.xlu0 %v1534, 28
      %v1626 = vpop.permute.xlu0 %1625
      %1627 = vrot.lane.b32.xlu0 %v1535, 28
      %v1628 = vpop.permute.xlu0 %1627
      %1629 = vrot.lane.b32.xlu0 %v1536, 28
      %v1630 = vpop.permute.xlu0 %1629
      %1631 = vrot.lane.b32.xlu0 %v1537, 28
      %v1632 = vpop.permute.xlu0 %1631
      %1633 = vrot.lane.b32.xlu0 %v1538, 28
      %v1634 = vpop.permute.xlu0 %1633
      %vm1667 = vcmask 261344
      %1668 = vst.msk [vmem:[#allocation3] sm:$0xff] %vm1667, %v1572
      %1669 = vst.msk [vmem:[#allocation3 + $0x8] sm:$0xff] %vm1667, %v1574
      %1670 = vst.msk [vmem:[#allocation3 + $0x10] sm:$0xff] %vm1667, %v1576
      %1671 = vst.msk [vmem:[#allocation3 + $0x18] sm:$0xff] %vm1667, %v1578
      %1672 = vst.msk [vmem:[#allocation3 + $0x20] sm:$0xff] %vm1667, %v1580
      %1673 = vst.msk [vmem:[#allocation3 + $0x28] sm:$0xff] %vm1667, %v1582
      %1674 = vst.msk [vmem:[#allocation3 + $0x30] sm:$0xff] %vm1667, %v1584
      %1675 = vst.msk [vmem:[#allocation3 + $0x38] sm:$0xff] %vm1667, %v1586
      %1676 = vst.msk [vmem:[#allocation3 + $0x40] sm:$0xff] %vm1667, %v1588
      %1677 = vst.msk [vmem:[#allocation3 + $0x48] sm:$0xff] %vm1667, %v1590
      %1678 = vst.msk [vmem:[#allocation3 + $0x50] sm:$0xff] %vm1667, %v1592
      %1679 = vst.msk [vmem:[#allocation3 + $0x58] sm:$0xff] %vm1667, %v1594
      %1680 = vst.msk [vmem:[#allocation3 + $0x60] sm:$0xff] %vm1667, %v1596
      %1681 = vst.msk [vmem:[#allocation3 + $0x68] sm:$0xff] %vm1667, %v1598
      %1682 = vst.msk [vmem:[#allocation3 + $0x70] sm:$0xff] %vm1667, %v1600
      %1683 = vst.msk [vmem:[#allocation3 + $0x78] sm:$0xff] %vm1667, %v1602
      %1684 = vst.msk [vmem:[#allocation3 + $0x80] sm:$0xff] %vm1667, %v1604
      %1685 = vst.msk [vmem:[#allocation3 + $0x88] sm:$0xff] %vm1667, %v1606
      %1686 = vst.msk [vmem:[#allocation3 + $0x90] sm:$0xff] %vm1667, %v1608
      %1687 = vst.msk [vmem:[#allocation3 + $0x98] sm:$0xff] %vm1667, %v1610
      %1688 = vst.msk [vmem:[#allocation3 + $0xa0] sm:$0xff] %vm1667, %v1612
      %1689 = vst.msk [vmem:[#allocation3 + $0xa8] sm:$0xff] %vm1667, %v1614
      %1690 = vst.msk [vmem:[#allocation3 + $0xb0] sm:$0xff] %vm1667, %v1616
      %1691 = vst.msk [vmem:[#allocation3 + $0xb8] sm:$0xff] %vm1667, %v1618
      %1692 = vst.msk [vmem:[#allocation3 + $0xc0] sm:$0xff] %vm1667, %v1620
      %1693 = vst.msk [vmem:[#allocation3 + $0xc8] sm:$0xff] %vm1667, %v1622
      %1694 = vst.msk [vmem:[#allocation3 + $0xd0] sm:$0xff] %vm1667, %v1624
      %1695 = vst.msk [vmem:[#allocation3 + $0xd8] sm:$0xff] %vm1667, %v1626
      %1696 = vst.msk [vmem:[#allocation3 + $0xe0] sm:$0xff] %vm1667, %v1628
      %1697 = vst.msk [vmem:[#allocation3 + $0xe8] sm:$0xff] %vm1667, %v1630
      %1698 = vst.msk [vmem:[#allocation3 + $0xf0] sm:$0xff] %vm1667, %v1632
      %1699 = vst.msk [vmem:[#allocation3 + $0xf8] sm:$0xff] %vm1667, %v1634
      %v1700 = vld [vmem:[%s1313 + $0x2] sm:$0xff]
      %v1701 = vld [vmem:[%s1313 + $0xa] sm:$0xff]
      %v1702 = vld [vmem:[%s1313 + $0x1a] sm:$0xff]
      %v1703 = vld [vmem:[%s1313 + $0x22] sm:$0xff]
      %v1704 = vld [vmem:[%s1313 + $0x32] sm:$0xff]
      %v1705 = vld [vmem:[%s1313 + $0x3a] sm:$0xff]
      %v1706 = vld [vmem:[%s1313 + $0x4a] sm:$0xff]
      %v1707 = vld [vmem:[%s1313 + $0x52] sm:$0xff]
      %v1708 = vld [vmem:[%s1313 + $0x62] sm:$0xff]
      %v1709 = vld [vmem:[%s1313 + $0x6a] sm:$0xff]
      %v1710 = vld [vmem:[%s1313 + $0x7a] sm:$0xff]
      %v1711 = vld [vmem:[%s1313 + $0x82] sm:$0xff]
      %v1712 = vld [vmem:[%s1313 + $0x92] sm:$0xff]
      %v1713 = vld [vmem:[%s1313 + $0x9a] sm:$0xff]
      %v1714 = vld [vmem:[%s1313 + $0xaa] sm:$0xff]
      %v1715 = vld [vmem:[%s1313 + $0xb2] sm:$0xff]
      %v1716 = vld [vmem:[%s1313 + $0xc2] sm:$0xff]
      %v1717 = vld [vmem:[%s1313 + $0xca] sm:$0xff]
      %v1718 = vld [vmem:[%s1313 + $0xda] sm:$0xff]
      %v1719 = vld [vmem:[%s1313 + $0xe2] sm:$0xff]
      %v1720 = vld [vmem:[%s1313 + $0xf2] sm:$0xff]
      %v1721 = vld [vmem:[%s1313 + $0xfa] sm:$0xff]
      %v1722 = vld [vmem:[%s1313 + $0x10a] sm:$0xff]
      %v1723 = vld [vmem:[%s1313 + $0x112] sm:$0xff]
      %v1724 = vld [vmem:[%s1313 + $0x122] sm:$0xff]
      %v1725 = vld [vmem:[%s1313 + $0x12a] sm:$0xff]
      %v1726 = vld [vmem:[%s1313 + $0x13a] sm:$0xff]
      %v1727 = vld [vmem:[%s1313 + $0x142] sm:$0xff]
      %v1728 = vld [vmem:[%s1313 + $0x152] sm:$0xff]
      %v1729 = vld [vmem:[%s1313 + $0x15a] sm:$0xff]
      %v1730 = vld [vmem:[%s1313 + $0x16a] sm:$0xff]
      %v1731 = vld [vmem:[%s1313 + $0x172] sm:$0xff]
      %1764 = vrot.lane.b32.xlu0 %v1700, 32
      %v1765 = vpop.permute.xlu0 %1764
      %1766 = vrot.lane.b32.xlu0 %v1701, 32
      %v1767 = vpop.permute.xlu0 %1766
      %1768 = vrot.lane.b32.xlu0 %v1702, 32
      %v1769 = vpop.permute.xlu0 %1768
      %1770 = vrot.lane.b32.xlu0 %v1703, 32
      %v1771 = vpop.permute.xlu0 %1770
      %1772 = vrot.lane.b32.xlu0 %v1704, 32
      %v1773 = vpop.permute.xlu0 %1772
      %1774 = vrot.lane.b32.xlu0 %v1705, 32
      %v1775 = vpop.permute.xlu0 %1774
      %1776 = vrot.lane.b32.xlu0 %v1706, 32
      %v1777 = vpop.permute.xlu0 %1776
      %1778 = vrot.lane.b32.xlu0 %v1707, 32
      %v1779 = vpop.permute.xlu0 %1778
      %1780 = vrot.lane.b32.xlu0 %v1708, 32
      %v1781 = vpop.permute.xlu0 %1780
      %1782 = vrot.lane.b32.xlu0 %v1709, 32
      %v1783 = vpop.permute.xlu0 %1782
      %1784 = vrot.lane.b32.xlu0 %v1710, 32
      %v1785 = vpop.permute.xlu0 %1784
      %1786 = vrot.lane.b32.xlu0 %v1711, 32
      %v1787 = vpop.permute.xlu0 %1786
      %1788 = vrot.lane.b32.xlu0 %v1712, 32
      %v1789 = vpop.permute.xlu0 %1788
      %1790 = vrot.lane.b32.xlu0 %v1713, 32
      %v1791 = vpop.permute.xlu0 %1790
      %1792 = vrot.lane.b32.xlu0 %v1714, 32
      %v1793 = vpop.permute.xlu0 %1792
      %1794 = vrot.lane.b32.xlu0 %v1715, 32
      %v1795 = vpop.permute.xlu0 %1794
      %1796 = vrot.lane.b32.xlu0 %v1716, 32
      %v1797 = vpop.permute.xlu0 %1796
      %1798 = vrot.lane.b32.xlu0 %v1717, 32
      %v1799 = vpop.permute.xlu0 %1798
      %1800 = vrot.lane.b32.xlu0 %v1718, 32
      %v1801 = vpop.permute.xlu0 %1800
      %1802 = vrot.lane.b32.xlu0 %v1719, 32
      %v1803 = vpop.permute.xlu0 %1802
      %1804 = vrot.lane.b32.xlu0 %v1720, 32
      %v1805 = vpop.permute.xlu0 %1804
      %1806 = vrot.lane.b32.xlu0 %v1721, 32
      %v1807 = vpop.permute.xlu0 %1806
      %1808 = vrot.lane.b32.xlu0 %v1722, 32
      %v1809 = vpop.permute.xlu0 %1808
      %1810 = vrot.lane.b32.xlu0 %v1723, 32
      %v1811 = vpop.permute.xlu0 %1810
      %1812 = vrot.lane.b32.xlu0 %v1724, 32
      %v1813 = vpop.permute.xlu0 %1812
      %1814 = vrot.lane.b32.xlu0 %v1725, 32
      %v1815 = vpop.permute.xlu0 %1814
      %1816 = vrot.lane.b32.xlu0 %v1726, 32
      %v1817 = vpop.permute.xlu0 %1816
      %1818 = vrot.lane.b32.xlu0 %v1727, 32
      %v1819 = vpop.permute.xlu0 %1818
      %1820 = vrot.lane.b32.xlu0 %v1728, 32
      %v1821 = vpop.permute.xlu0 %1820
      %1822 = vrot.lane.b32.xlu0 %v1729, 32
      %v1823 = vpop.permute.xlu0 %1822
      %1824 = vrot.lane.b32.xlu0 %v1730, 32
      %v1825 = vpop.permute.xlu0 %1824
      %1826 = vrot.lane.b32.xlu0 %v1731, 32
      %v1827 = vpop.permute.xlu0 %1826
      %vm1860 = vcmask 294144
      %1861 = vst.msk [vmem:[#allocation3] sm:$0xff] %vm1860, %v1765
      %1862 = vst.msk [vmem:[#allocation3 + $0x8] sm:$0xff] %vm1860, %v1767
      %1863 = vst.msk [vmem:[#allocation3 + $0x10] sm:$0xff] %vm1860, %v1769
      %1864 = vst.msk [vmem:[#allocation3 + $0x18] sm:$0xff] %vm1860, %v1771
      %1865 = vst.msk [vmem:[#allocation3 + $0x20] sm:$0xff] %vm1860, %v1773
      %1866 = vst.msk [vmem:[#allocation3 + $0x28] sm:$0xff] %vm1860, %v1775
      %1867 = vst.msk [vmem:[#allocation3 + $0x30] sm:$0xff] %vm1860, %v1777
      %1868 = vst.msk [vmem:[#allocation3 + $0x38] sm:$0xff] %vm1860, %v1779
      %1869 = vst.msk [vmem:[#allocation3 + $0x40] sm:$0xff] %vm1860, %v1781
      %1870 = vst.msk [vmem:[#allocation3 + $0x48] sm:$0xff] %vm1860, %v1783
      %1871 = vst.msk [vmem:[#allocation3 + $0x50] sm:$0xff] %vm1860, %v1785
      %1872 = vst.msk [vmem:[#allocation3 + $0x58] sm:$0xff] %vm1860, %v1787
      %1873 = vst.msk [vmem:[#allocation3 + $0x60] sm:$0xff] %vm1860, %v1789
      %1874 = vst.msk [vmem:[#allocation3 + $0x68] sm:$0xff] %vm1860, %v1791
      %1875 = vst.msk [vmem:[#allocation3 + $0x70] sm:$0xff] %vm1860, %v1793
      %1876 = vst.msk [vmem:[#allocation3 + $0x78] sm:$0xff] %vm1860, %v1795
      %1877 = vst.msk [vmem:[#allocation3 + $0x80] sm:$0xff] %vm1860, %v1797
      %1878 = vst.msk [vmem:[#allocation3 + $0x88] sm:$0xff] %vm1860, %v1799
      %1879 = vst.msk [vmem:[#allocation3 + $0x90] sm:$0xff] %vm1860, %v1801
      %1880 = vst.msk [vmem:[#allocation3 + $0x98] sm:$0xff] %vm1860, %v1803
      %1881 = vst.msk [vmem:[#allocation3 + $0xa0] sm:$0xff] %vm1860, %v1805
      %1882 = vst.msk [vmem:[#allocation3 + $0xa8] sm:$0xff] %vm1860, %v1807
      %1883 = vst.msk [vmem:[#allocation3 + $0xb0] sm:$0xff] %vm1860, %v1809
      %1884 = vst.msk [vmem:[#allocation3 + $0xb8] sm:$0xff] %vm1860, %v1811
      %1885 = vst.msk [vmem:[#allocation3 + $0xc0] sm:$0xff] %vm1860, %v1813
      %1886 = vst.msk [vmem:[#allocation3 + $0xc8] sm:$0xff] %vm1860, %v1815
      %1887 = vst.msk [vmem:[#allocation3 + $0xd0] sm:$0xff] %vm1860, %v1817
      %1888 = vst.msk [vmem:[#allocation3 + $0xd8] sm:$0xff] %vm1860, %v1819
      %1889 = vst.msk [vmem:[#allocation3 + $0xe0] sm:$0xff] %vm1860, %v1821
      %1890 = vst.msk [vmem:[#allocation3 + $0xe8] sm:$0xff] %vm1860, %v1823
      %1891 = vst.msk [vmem:[#allocation3 + $0xf0] sm:$0xff] %vm1860, %v1825
      %1892 = vst.msk [vmem:[#allocation3 + $0xf8] sm:$0xff] %vm1860, %v1827
      %v1893 = vld [vmem:[#allocation3] sm:$0xff]
      %v1894 = vld [vmem:[#allocation3 + $0x8] sm:$0xff]
      %v1895 = vld [vmem:[#allocation3 + $0x10] sm:$0xff]
      %v1896 = vld [vmem:[#allocation3 + $0x18] sm:$0xff]
      %v1897 = vld [vmem:[#allocation3 + $0x20] sm:$0xff]
      %v1898 = vld [vmem:[#allocation3 + $0x28] sm:$0xff]
      %v1899 = vld [vmem:[#allocation3 + $0x30] sm:$0xff]
      %v1900 = vld [vmem:[#allocation3 + $0x38] sm:$0xff]
      %v1901 = vld [vmem:[#allocation3 + $0x40] sm:$0xff]
      %v1902 = vld [vmem:[#allocation3 + $0x48] sm:$0xff]
      %v1903 = vld [vmem:[#allocation3 + $0x50] sm:$0xff]
      %v1904 = vld [vmem:[#allocation3 + $0x58] sm:$0xff]
      %v1905 = vld [vmem:[#allocation3 + $0x60] sm:$0xff]
      %v1906 = vld [vmem:[#allocation3 + $0x68] sm:$0xff]
      %v1907 = vld [vmem:[#allocation3 + $0x70] sm:$0xff]
      %v1908 = vld [vmem:[#allocation3 + $0x78] sm:$0xff]
      %v1909 = vld [vmem:[#allocation3 + $0x80] sm:$0xff]
      %v1910 = vld [vmem:[#allocation3 + $0x88] sm:$0xff]
      %v1911 = vld [vmem:[#allocation3 + $0x90] sm:$0xff]
      %v1912 = vld [vmem:[#allocation3 + $0x98] sm:$0xff]
      %v1913 = vld [vmem:[#allocation3 + $0xa0] sm:$0xff]
      %v1914 = vld [vmem:[#allocation3 + $0xa8] sm:$0xff]
      %v1915 = vld [vmem:[#allocation3 + $0xb0] sm:$0xff]
      %v1916 = vld [vmem:[#allocation3 + $0xb8] sm:$0xff]
      %v1917 = vld [vmem:[#allocation3 + $0xc0] sm:$0xff]
      %v1918 = vld [vmem:[#allocation3 + $0xc8] sm:$0xff]
      %v1919 = vld [vmem:[#allocation3 + $0xd0] sm:$0xff]
      %v1920 = vld [vmem:[#allocation3 + $0xd8] sm:$0xff]
      %v1921 = vld [vmem:[#allocation3 + $0xe0] sm:$0xff]
      %v1922 = vld [vmem:[#allocation3 + $0xe8] sm:$0xff]
      %v1923 = vld [vmem:[#allocation3 + $0xf0] sm:$0xff]
      %v1924 = vld [vmem:[#allocation3 + $0xf8] sm:$0xff]
      %v1925 = vld [vmem:[%s1] sm:$0xff]
      %v1926 = vld [vmem:[%s1 + $0x8] sm:$0xff]
      %v1927 = vld [vmem:[%s1 + $0x10] sm:$0xff]
      %v1928 = vld [vmem:[%s1 + $0x18] sm:$0xff]
      %v1929 = vld [vmem:[%s1 + $0x20] sm:$0xff]
      %vm1930 = vcmask 326656
      %v1932 = vsel %vm1930, %v1893, 0
      %v1935 = vsel %vm1930, %v1894, 0
      %v1938 = vsel %vm1930, %v1895, 0
      %v1941 = vsel %vm1930, %v1896, 0
      %v1944 = vsel %vm1930, %v1897, 0
      %v1947 = vsel %vm1930, %v1898, 0
      %v1950 = vsel %vm1930, %v1899, 0
      %v1953 = vsel %vm1930, %v1900, 0
      %v1956 = vsel %vm1930, %v1901, 0
      %v1959 = vsel %vm1930, %v1902, 0
      %v1962 = vsel %vm1930, %v1903, 0
      %v1965 = vsel %vm1930, %v1904, 0
      %v1968 = vsel %vm1930, %v1905, 0
      %v1971 = vsel %vm1930, %v1906, 0
      %v1974 = vsel %vm1930, %v1907, 0
      %v1977 = vsel %vm1930, %v1908, 0
      %v1980 = vsel %vm1930, %v1909, 0
      %v1983 = vsel %vm1930, %v1910, 0
      %v1986 = vsel %vm1930, %v1911, 0
      %v1989 = vsel %vm1930, %v1912, 0
      %v1992 = vsel %vm1930, %v1913, 0
      %v1995 = vsel %vm1930, %v1914, 0
      %v1998 = vsel %vm1930, %v1915, 0
      %v2001 = vsel %vm1930, %v1916, 0
      %v2004 = vsel %vm1930, %v1917, 0
      %v2007 = vsel %vm1930, %v1918, 0
      %v2010 = vsel %vm1930, %v1919, 0
      %v2013 = vsel %vm1930, %v1920, 0
      %v2016 = vsel %vm1930, %v1921, 0
      %v2019 = vsel %vm1930, %v1922, 0
      %v2022 = vsel %vm1930, %v1923, 0
      %v2025 = vsel %vm1930, %v1924, 0
      %2027 = vmatprep.subr.mxu0 0.0
      %2028 = vmatpush1.msra.mxu0 0.0
      %2029 = vmatprep.subr.mxu0 0.0
      %2030 = vmatpush1.msra.mxu0 0.0
      %2031 = vmatprep.subr.mxu0 0.0
      %2032 = vmatpush1.msra.mxu0 0.0
      %2033 = vmatprep.subr.mxu0 0.0
      %2034 = vmatpush1.msra.mxu0 0.0
      %2035 = vmatprep.subr.mxu0 0.0
      %2036 = vmatpush1.msra.mxu0 0.0
      %2037 = vmatprep.subr.mxu0 0.0
      %2038 = vmatpush1.msra.mxu0 0.0
      %2039 = vmatprep.subr.mxu0 0.0
      %2040 = vmatpush1.msra.mxu0 0.0
      %2041 = vmatprep.subr.mxu0 0.0
      %2042 = vmatpush1.msra.mxu0 0.0
      %2043 = vmatprep.subr.mxu0 0.0
      %2044 = vmatpush1.msra.mxu0 0.0
      %2045 = vmatprep.subr.mxu0 0.0
      %2046 = vmatpush1.msra.mxu0 0.0
      %2047 = vmatprep.subr.mxu0 0.0
      %2048 = vmatpush1.msra.mxu0 0.0
      %2049 = vmatprep.subr.mxu0 0.0
      %2050 = vmatpush1.msra.mxu0 %v1929
      %2051 = vmatprep.subr.mxu0 0.0
      %2052 = vmatpush1.msra.mxu0 %v1928
      %2053 = vmatprep.subr.mxu0 0.0
      %2054 = vmatpush1.msra.mxu0 %v1927
      %2055 = vmatprep.subr.mxu0 0.0
      %2056 = vmatpush1.msra.mxu0 %v1926
      %2057 = vmatprep.subr.mxu0 0.0
      %2058 = vmatpush1.msra.mxu0 %v1925
      %2059 = vmatprep.subr.mxu0 0.0
      %2060 = vmatpush2.msra.mxu0 0.0
      %2061 = vmatprep.subr.mxu0 0.0
      %2062 = vmatpush2.msra.mxu0 0.0
      %2063 = vmatprep.subr.mxu0 0.0
      %2064 = vmatpush2.msra.mxu0 0.0
      %2065 = vmatprep.subr.mxu0 0.0
      %2066 = vmatpush2.msra.mxu0 0.0
      %2067 = vmatprep.subr.mxu0 0.0
      %2068 = vmatpush2.msra.mxu0 0.0
      %2069 = vmatprep.subr.mxu0 0.0
      %2070 = vmatpush2.msra.mxu0 0.0
      %2071 = vmatprep.subr.mxu0 0.0
      %2072 = vmatpush2.msra.mxu0 0.0
      %2073 = vmatprep.subr.mxu0 0.0
      %2074 = vmatpush2.msra.mxu0 0.0
      %2075 = vmatprep.subr.mxu0 0.0
      %2076 = vmatpush2.msra.mxu0 0.0
      %2077 = vmatprep.subr.mxu0 0.0
      %2078 = vmatpush2.msra.mxu0 0.0
      %2079 = vmatprep.subr.mxu0 0.0
      %2080 = vmatpush2.msra.mxu0 0.0
      %2081 = vmatprep.subr.mxu0 0.0
      %2082 = vmatpush2.msra.mxu0 0.0
      %2083 = vmatprep.subr.mxu0 0.0
      %2084 = vmatpush2.msra.mxu0 0.0
      %2085 = vmatprep.subr.mxu0 0.0
      %2086 = vmatpush2.msra.mxu0 0.0
      %2087 = vmatprep.subr.mxu0 0.0
      %2088 = vmatpush2.msra.mxu0 0.0
      %2089 = vmatprep.subr.mxu0 0.0
      %2090 = vmatpush2.msra.mxu0 0.0
      %2091 = vmatprep.mubr.f32.mxu0 0.0
      %2092 = vmatmul.mubr.f32.gmra.mxu0 %v1932
      %v2093 = vpop.f32.mrf.mxu0
      %v2094 = vadd.f32 0.0, %v2093
      %v2095 = vpop.f32.mrf.mxu0
      %2096 = vmatprep.mubr.f32.mxu0 0.0
      %2097 = vmatmul.mubr.f32.gmra.mxu0 %v1935
      %v2098 = vpop.f32.mrf.mxu0
      %v2099 = vadd.f32 0.0, %v2098
      %v2100 = vpop.f32.mrf.mxu0
      %2101 = vmatprep.mubr.f32.mxu0 0.0
      %2102 = vmatmul.mubr.f32.gmra.mxu0 %v1938
      %v2103 = vpop.f32.mrf.mxu0
      %v2104 = vadd.f32 0.0, %v2103
      %v2105 = vpop.f32.mrf.mxu0
      %2106 = vmatprep.mubr.f32.mxu0 0.0
      %2107 = vmatmul.mubr.f32.gmra.mxu0 %v1941
      %v2108 = vpop.f32.mrf.mxu0
      %v2109 = vadd.f32 0.0, %v2108
      %v2110 = vpop.f32.mrf.mxu0
      %2111 = vmatprep.mubr.f32.mxu0 0.0
      %2112 = vmatmul.mubr.f32.gmra.mxu0 %v1944
      %v2113 = vpop.f32.mrf.mxu0
      %v2114 = vadd.f32 0.0, %v2113
      %v2115 = vpop.f32.mrf.mxu0
      %2116 = vmatprep.mubr.f32.mxu0 0.0
      %2117 = vmatmul.mubr.f32.gmra.mxu0 %v1947
      %v2118 = vpop.f32.mrf.mxu0
      %v2119 = vadd.f32 0.0, %v2118
      %v2120 = vpop.f32.mrf.mxu0
      %2121 = vmatprep.mubr.f32.mxu0 0.0
      %2122 = vmatmul.mubr.f32.gmra.mxu0 %v1950
      %v2123 = vpop.f32.mrf.mxu0
      %v2124 = vadd.f32 0.0, %v2123
      %v2125 = vpop.f32.mrf.mxu0
      %2126 = vmatprep.mubr.f32.mxu0 0.0
      %2127 = vmatmul.mubr.f32.gmra.mxu0 %v1953
      %v2128 = vpop.f32.mrf.mxu0
      %v2129 = vadd.f32 0.0, %v2128
      %v2130 = vpop.f32.mrf.mxu0
      %2131 = vmatprep.mubr.f32.mxu0 0.0
      %2132 = vmatmul.mubr.f32.gmra.mxu0 %v1956
      %v2133 = vpop.f32.mrf.mxu0
      %v2134 = vadd.f32 0.0, %v2133
      %v2135 = vpop.f32.mrf.mxu0
      %2136 = vmatprep.mubr.f32.mxu0 0.0
      %2137 = vmatmul.mubr.f32.gmra.mxu0 %v1959
      %v2138 = vpop.f32.mrf.mxu0
      %v2139 = vadd.f32 0.0, %v2138
      %v2140 = vpop.f32.mrf.mxu0
      %2141 = vmatprep.mubr.f32.mxu0 0.0
      %2142 = vmatmul.mubr.f32.gmra.mxu0 %v1962
      %v2143 = vpop.f32.mrf.mxu0
      %v2144 = vadd.f32 0.0, %v2143
      %v2145 = vpop.f32.mrf.mxu0
      %2146 = vmatprep.mubr.f32.mxu0 0.0
      %2147 = vmatmul.mubr.f32.gmra.mxu0 %v1965
      %v2148 = vpop.f32.mrf.mxu0
      %v2149 = vadd.f32 0.0, %v2148
      %v2150 = vpop.f32.mrf.mxu0
      %2151 = vmatprep.mubr.f32.mxu0 0.0
      %2152 = vmatmul.mubr.f32.gmra.mxu0 %v1968
      %v2153 = vpop.f32.mrf.mxu0
      %v2154 = vadd.f32 0.0, %v2153
      %v2155 = vpop.f32.mrf.mxu0
      %2156 = vmatprep.mubr.f32.mxu0 0.0
      %2157 = vmatmul.mubr.f32.gmra.mxu0 %v1971
      %v2158 = vpop.f32.mrf.mxu0
      %v2159 = vadd.f32 0.0, %v2158
      %v2160 = vpop.f32.mrf.mxu0
      %2161 = vmatprep.mubr.f32.mxu0 0.0
      %2162 = vmatmul.mubr.f32.gmra.mxu0 %v1974
      %v2163 = vpop.f32.mrf.mxu0
      %v2164 = vadd.f32 0.0, %v2163
      %v2165 = vpop.f32.mrf.mxu0
      %2166 = vmatprep.mubr.f32.mxu0 0.0
      %2167 = vmatmul.mubr.f32.gmra.mxu0 %v1977
      %v2168 = vpop.f32.mrf.mxu0
      %v2169 = vadd.f32 0.0, %v2168
      %v2170 = vpop.f32.mrf.mxu0
      %2171 = vmatprep.mubr.f32.mxu0 0.0
      %2172 = vmatmul.mubr.f32.gmra.mxu0 %v1980
      %v2173 = vpop.f32.mrf.mxu0
      %v2174 = vadd.f32 0.0, %v2173
      %v2175 = vpop.f32.mrf.mxu0
      %2176 = vmatprep.mubr.f32.mxu0 0.0
      %2177 = vmatmul.mubr.f32.gmra.mxu0 %v1983
      %v2178 = vpop.f32.mrf.mxu0
      %v2179 = vadd.f32 0.0, %v2178
      %v2180 = vpop.f32.mrf.mxu0
      %2181 = vmatprep.mubr.f32.mxu0 0.0
      %2182 = vmatmul.mubr.f32.gmra.mxu0 %v1986
      %v2183 = vpop.f32.mrf.mxu0
      %v2184 = vadd.f32 0.0, %v2183
      %v2185 = vpop.f32.mrf.mxu0
      %2186 = vmatprep.mubr.f32.mxu0 0.0
      %2187 = vmatmul.mubr.f32.gmra.mxu0 %v1989
      %v2188 = vpop.f32.mrf.mxu0
      %v2189 = vadd.f32 0.0, %v2188
      %v2190 = vpop.f32.mrf.mxu0
      %2191 = vmatprep.mubr.f32.mxu0 0.0
      %2192 = vmatmul.mubr.f32.gmra.mxu0 %v1992
      %v2193 = vpop.f32.mrf.mxu0
      %v2194 = vadd.f32 0.0, %v2193
      %v2195 = vpop.f32.mrf.mxu0
      %2196 = vmatprep.mubr.f32.mxu0 0.0
      %2197 = vmatmul.mubr.f32.gmra.mxu0 %v1995
      %v2198 = vpop.f32.mrf.mxu0
      %v2199 = vadd.f32 0.0, %v2198
      %v2200 = vpop.f32.mrf.mxu0
      %2201 = vmatprep.mubr.f32.mxu0 0.0
      %2202 = vmatmul.mubr.f32.gmra.mxu0 %v1998
      %v2203 = vpop.f32.mrf.mxu0
      %v2204 = vadd.f32 0.0, %v2203
      %v2205 = vpop.f32.mrf.mxu0
      %2206 = vmatprep.mubr.f32.mxu0 0.0
      %2207 = vmatmul.mubr.f32.gmra.mxu0 %v2001
      %v2208 = vpop.f32.mrf.mxu0
      %v2209 = vadd.f32 0.0, %v2208
      %v2210 = vpop.f32.mrf.mxu0
      %2211 = vmatprep.mubr.f32.mxu0 0.0
      %2212 = vmatmul.mubr.f32.gmra.mxu0 %v2004
      %v2213 = vpop.f32.mrf.mxu0
      %v2214 = vadd.f32 0.0, %v2213
      %v2215 = vpop.f32.mrf.mxu0
      %2216 = vmatprep.mubr.f32.mxu0 0.0
      %2217 = vmatmul.mubr.f32.gmra.mxu0 %v2007
      %v2218 = vpop.f32.mrf.mxu0
      %v2219 = vadd.f32 0.0, %v2218
      %v2220 = vpop.f32.mrf.mxu0
      %2221 = vmatprep.mubr.f32.mxu0 0.0
      %2222 = vmatmul.mubr.f32.gmra.mxu0 %v2010
      %v2223 = vpop.f32.mrf.mxu0
      %v2224 = vadd.f32 0.0, %v2223
      %v2225 = vpop.f32.mrf.mxu0
      %2226 = vmatprep.mubr.f32.mxu0 0.0
      %2227 = vmatmul.mubr.f32.gmra.mxu0 %v2013
      %v2228 = vpop.f32.mrf.mxu0
      %v2229 = vadd.f32 0.0, %v2228
      %v2230 = vpop.f32.mrf.mxu0
      %2231 = vmatprep.mubr.f32.mxu0 0.0
      %2232 = vmatmul.mubr.f32.gmra.mxu0 %v2016
      %v2233 = vpop.f32.mrf.mxu0
      %v2234 = vadd.f32 0.0, %v2233
      %v2235 = vpop.f32.mrf.mxu0
      %2236 = vmatprep.mubr.f32.mxu0 0.0
      %2237 = vmatmul.mubr.f32.gmra.mxu0 %v2019
      %v2238 = vpop.f32.mrf.mxu0
      %v2239 = vadd.f32 0.0, %v2238
      %v2240 = vpop.f32.mrf.mxu0
      %2241 = vmatprep.mubr.f32.mxu0 0.0
      %2242 = vmatmul.mubr.f32.gmra.mxu0 %v2022
      %v2243 = vpop.f32.mrf.mxu0
      %v2244 = vadd.f32 0.0, %v2243
      %v2245 = vpop.f32.mrf.mxu0
      %2246 = vmatprep.mubr.f32.mxu0 0.0
      %2247 = vmatmul.mubr.f32.gmra.mxu0 %v2025
      %v2248 = vpop.f32.mrf.mxu0
      %v2249 = vadd.f32 0.0, %v2248
      %v2250 = vpop.f32.mrf.mxu0
      %2251 = vdwg.mxu0
      %vm2252 = vcmask 64512
      %2253 = vst.msk [vmem:[%s143] sm:$0xff] %vm2252, %v2094
      %2254 = vst.msk [vmem:[%s143 + $0x8] sm:$0xff] %vm2252, %v2099
      %2255 = vst.msk [vmem:[%s143 + $0x10] sm:$0xff] %vm2252, %v2104
      %2256 = vst.msk [vmem:[%s143 + $0x18] sm:$0xff] %vm2252, %v2109
      %2257 = vst.msk [vmem:[%s143 + $0x20] sm:$0xff] %vm2252, %v2114
      %2258 = vst.msk [vmem:[%s143 + $0x28] sm:$0xff] %vm2252, %v2119
      %2259 = vst.msk [vmem:[%s143 + $0x30] sm:$0xff] %vm2252, %v2124
      %2260 = vst.msk [vmem:[%s143 + $0x38] sm:$0xff] %vm2252, %v2129
      %2261 = vst.msk [vmem:[%s143 + $0x40] sm:$0xff] %vm2252, %v2134
      %2262 = vst.msk [vmem:[%s143 + $0x48] sm:$0xff] %vm2252, %v2139
      %2263 = vst.msk [vmem:[%s143 + $0x50] sm:$0xff] %vm2252, %v2144
      %2264 = vst.msk [vmem:[%s143 + $0x58] sm:$0xff] %vm2252, %v2149
      %2265 = vst.msk [vmem:[%s143 + $0x60] sm:$0xff] %vm2252, %v2154
      %2266 = vst.msk [vmem:[%s143 + $0x68] sm:$0xff] %vm2252, %v2159
      %2267 = vst.msk [vmem:[%s143 + $0x70] sm:$0xff] %vm2252, %v2164
      %2268 = vst.msk [vmem:[%s143 + $0x78] sm:$0xff] %vm2252, %v2169
      %2269 = vst.msk [vmem:[%s143 + $0x80] sm:$0xff] %vm2252, %v2174
      %2270 = vst.msk [vmem:[%s143 + $0x88] sm:$0xff] %vm2252, %v2179
      %2271 = vst.msk [vmem:[%s143 + $0x90] sm:$0xff] %vm2252, %v2184
      %2272 = vst.msk [vmem:[%s143 + $0x98] sm:$0xff] %vm2252, %v2189
      %2273 = vst.msk [vmem:[%s143 + $0xa0] sm:$0xff] %vm2252, %v2194
      %2274 = vst.msk [vmem:[%s143 + $0xa8] sm:$0xff] %vm2252, %v2199
      %2275 = vst.msk [vmem:[%s143 + $0xb0] sm:$0xff] %vm2252, %v2204
      %2276 = vst.msk [vmem:[%s143 + $0xb8] sm:$0xff] %vm2252, %v2209
      %2277 = vst.msk [vmem:[%s143 + $0xc0] sm:$0xff] %vm2252, %v2214
      %2278 = vst.msk [vmem:[%s143 + $0xc8] sm:$0xff] %vm2252, %v2219
      %2279 = vst.msk [vmem:[%s143 + $0xd0] sm:$0xff] %vm2252, %v2224
      %2280 = vst.msk [vmem:[%s143 + $0xd8] sm:$0xff] %vm2252, %v2229
      %2281 = vst.msk [vmem:[%s143 + $0xe0] sm:$0xff] %vm2252, %v2234
      %2282 = vst.msk [vmem:[%s143 + $0xe8] sm:$0xff] %vm2252, %v2239
      %2283 = vst.msk [vmem:[%s143 + $0xf0] sm:$0xff] %vm2252, %v2244
      %2284 = vst.msk [vmem:[%s143 + $0xf8] sm:$0xff] %vm2252, %v2249
      %p2285 = scmp.lt.s32.totalorder %s13, 1
      %s2286 = scalar_select %p2285, %s13, 1
      %s2287 = smul.addr %s2286, 32
      %s2288 = smul.addr %s2287, 8
      %s2289 = scalar_lea.vmem %s2, %s2288
      // Predicated region
      $region29: #{tpu_custom_call.1} parent=27 // pred_check
        %p2290 = pneg %p78
      $region30: #{tpu_custom_call.1} parent=27 // pred_check_branch
        %2292 = sbr.rel (%p2290) target = $region32
      $region31: #{tpu_custom_call.1} parent=27 // pred_region
        _
      $region32: #{tpu_custom_call.1} parent=27 // pred_fallthru
        _
    $region28: #{tpu_custom_call.1} parent=5 // pred_fallthru
      _
    %p2293 = scmp.le.s32.totalorder 2, %s8
    // Predicated region
    $region33: #{tpu_custom_call.1} parent=5 // pred_check
      %p2294 = pneg %p2293
    $region34: #{tpu_custom_call.1} parent=5 // pred_check_branch
      %2296 = sbr.rel (%p2294) target = $region36
    $region35: #{tpu_custom_call.1} parent=5 // pred_region
      %s2297 = ssub.s32 %s8, 2
      // Predicated region
      $region37: #{tpu_custom_call.1} parent=35 // pred_check
        %p2298 = pneg %p84
      $region38: #{tpu_custom_call.1} parent=35 // pred_check_branch
        %2300 = sbr.rel (%p2298) target = $region40
      $region39: #{tpu_custom_call.1} parent=35 // pred_region
        %p2301 = scmp.lt.s32.totalorder %s14, 1
        %s2302 = scalar_select %p2301, %s14, 1
        %s2303 = smul.addr %s2302, 32
        %s2304 = smul.addr %s2303, 8
        %s2305 = scalar_lea.vmem %s2, %s2304
      $region40: #{tpu_custom_call.1} parent=35 // pred_fallthru
        _
    $region36: #{tpu_custom_call.1} parent=5 // pred_fallthru
      _
  $region6: #{tpu_custom_call.1} parent=0 // loop_footer
    %s12 = sadd.s32 1, %s8
  $region7: #{tpu_custom_call.1} parent=0 // loop_footer_branch
    %7 = sbr.rel target = $region3
  $region8: #{tpu_custom_call.1} parent=0 // loop_exit
    _

</llo_original>
